<compile_context>
chip_gen: v5e
topology: v5e:2x2
jax: 0.10.0
libtpu: 0.0.40
codegen_flags: <defaults>
</compile_context>

<pallas_src>
import jax
import jax.numpy as jnp
import numpy as np
from jax import lax
from jax.experimental import pallas as pl
from jax.experimental.pallas import tpu as pltpu


def _gelu(u):
    # tanh-approx GELU (EUP-friendly); same formula used in the pure-JAX reference.
    c = 0.7978845608028654  # sqrt(2/pi)
    return 0.5 * u * (1.0 + jnp.tanh(c * (u + 0.044715 * u * u * u)))


def _hme_kernel(x_ref, pool_ref, wsT_ref, bs_ref, a_ref, wt_ref, bt_ref,
                wfa_ref, wfb_ref, bf_ref, o_ref):
    xb = x_ref[0]            # [C, L]   one batch element, channels on sublanes, pixels on lanes
    pool = pool_ref[...]     # [T, L]   masked per-frame mean weights (1/HW on valid pixels, 0 on pad)

    # ---- SpatialEncoder: 1x1 conv (C->C) + GELU, then per-frame global spatial mean-pool ----
    h = _gelu(jnp.dot(wsT_ref[...], xb, preferred_element_type=jnp.float32)
              + bs_ref[...])                                           # [C, L], bias bcast over lanes
    # Contract the lane (pixel) axis of both operands: pool[t,l] * h[c,l] -> spatial[t,c].
    dims = (((1,), (1,)), ((), ()))
    spatial = lax.dot_general(pool, h, dims,
                              preferred_element_type=jnp.float32)      # [T, C]

    # ---- MultiScaleTemporalEncoder: per-frame mean features -> causal multi-scale smoothing ----
    frames = lax.dot_general(pool, xb, dims,
                             preferred_element_type=jnp.float32)       # [T, C]
    acc = jnp.zeros(frames.shape, jnp.float32)
    for s in range(a_ref.shape[0]):                                    # static unroll (3 scales)
        smoothed = jnp.dot(a_ref[s], frames,
                           preferred_element_type=jnp.float32)         # [T, T] @ [T, C] -> [T, C]
        acc = acc + jnp.dot(smoothed, wt_ref[s],
                            preferred_element_type=jnp.float32)        # [T, C] @ [C, C]
    temporal = _gelu(acc + bt_ref[...])                                # [T, C]

    # ---- CrossModalFusion: concat folded into a split matmul, + bias, GELU ----
    fused = (jnp.dot(spatial, wfa_ref[...], preferred_element_type=jnp.float32)
             + jnp.dot(temporal, wfb_ref[...], preferred_element_type=jnp.float32)
             + bf_ref[...])                                            # [T, E]  (lane-dense)
    o_ref[0] = _gelu(fused).astype(o_ref.dtype)


def hierarchical_motion_encoder_forward(x, params):
    """x: [B, T, C, H, W] video latent -> [B, T, embedding_dim] motion embedding."""
    B, T, C, H, W = x.shape
    HW = H * W
    E = params["w_fuse_spatial"].shape[1]
    S = params["a_scales"].shape[0]

    # Lane-dense slab: [B, C, T*HW] (pixels of all frames on the lane axis), padded to 128.
    L = T * HW
    L_pad = ((L + 127) // 128) * 128
    x2 = jnp.transpose(x, (0, 2, 1, 3, 4)).reshape(B, C, L)   # layout plumbing only
    if L_pad != L:
        x2 = jnp.pad(x2, ((0, 0), (0, 0), (0, L_pad - L)))

    # Masked mean-pool matrix: pool[t, t*HW + i] = 1/HW for i < HW, 0 elsewhere (incl. padding).
    pool = np.zeros((T, L_pad), np.float32)
    for t in range(T):
        pool[t, t * HW:(t + 1) * HW] = 1.0 / HW
    pool = jnp.asarray(pool)

    wsT = params["w_spatial"].T                 # [C_out, C_in] so the conv is a plain 2-D matmul
    bs = params["b_spatial"].reshape(C, 1)      # per-output-channel bias, broadcast along lanes

    full2 = lambda b: (0, 0)
    full3 = lambda b: (0, 0, 0)

    return pl.pallas_call(
        _hme_kernel,
        out_shape=jax.ShapeDtypeStruct((B, T, E), x.dtype),
        grid_spec=pltpu.PrefetchScalarGridSpec(
            num_scalar_prefetch=0,
            grid=(B,),
            in_specs=[
                pl.BlockSpec((1, C, L_pad), lambda b: (b, 0, 0)),   # x slab (one batch element / step)
                pl.BlockSpec((T, L_pad), full2),                    # masked mean-pool matrix
                pl.BlockSpec((C, C), full2),                        # spatial 1x1-conv weight (transposed)
                pl.BlockSpec((C, 1), full2),                        # spatial bias
                pl.BlockSpec((S, T, T), full3),                     # multi-scale temporal smoothers
                pl.BlockSpec((S, C, C), full3),                     # per-scale temporal weights
                pl.BlockSpec((1, C), full2),                        # temporal bias
                pl.BlockSpec((C, E), full2),                        # fusion weight (spatial half)
                pl.BlockSpec((C, E), full2),                        # fusion weight (temporal half)
                pl.BlockSpec((1, E), full2),                        # fusion bias
            ],
            out_specs=pl.BlockSpec((1, T, E), lambda b: (b, 0, 0)),
        ),
        compiler_params=pltpu.CompilerParams(
            dimension_semantics=("parallel",),   # lets v7x shard the batch grid over its 2 TCs
        ),
    )(x2, pool, wsT, bs,
      params["a_scales"], params["w_temporal"], params["b_temporal"],
      params["w_fuse_spatial"], params["w_fuse_temporal"], params["b_fuse"])


def init_params(key, input_dim, embedding_dim, num_frames, scales=(1, 2, 4)):
    C, E, T = input_dim, embedding_dim, num_frames
    ks = jax.random.split(key, 6)
    # Causal moving-average matrices at each temporal scale.
    a = np.zeros((len(scales), T, T), np.float32)
    for si, s in enumerate(scales):
        for t in range(T):
            lo = max(0, t - s + 1)
            a[si, t, lo:t + 1] = 1.0 / (t - lo + 1)
    return {
        "w_spatial": jax.random.normal(ks[0], (C, C), jnp.float32) / np.sqrt(C),
        "b_spatial": 0.1 * jax.random.normal(ks[1], (1, C), jnp.float32),
        "a_scales": jnp.asarray(a),
        "w_temporal": jax.random.normal(ks[2], (len(scales), C, C), jnp.float32) / np.sqrt(C),
        "b_temporal": 0.1 * jax.random.normal(ks[3], (1, C), jnp.float32),
        "w_fuse_spatial": jax.random.normal(ks[4], (C, E), jnp.float32) / np.sqrt(2 * C),
        "w_fuse_temporal": jax.random.normal(ks[5], (C, E), jnp.float32) / np.sqrt(2 * C),
        "b_fuse": jnp.zeros((1, E), jnp.float32),
    }


def _reference_forward(x, params):
    """Pure-JAX reference (same math, unpadded) for correctness checking."""
    B, T, C, H, W = x.shape
    xc = jnp.transpose(x, (0, 1, 3, 4, 2)).reshape(B, T, H * W, C)
    h = _gelu(jnp.einsum("btnc,co->btno", xc, params["w_spatial"]) + params["b_spatial"][0])
    spatial = jnp.mean(h, axis=2)                                     # [B, T, C]
    frames = jnp.mean(xc, axis=2)                                     # [B, T, C]
    acc = jnp.zeros_like(frames)
    for s in range(params["a_scales"].shape[0]):
        smoothed = jnp.einsum("tu,buc->btc", params["a_scales"][s], frames)
        acc = acc + jnp.einsum("btc,co->bto", smoothed, params["w_temporal"][s])
    temporal = _gelu(acc + params["b_temporal"][0])
    fused = (jnp.einsum("btc,ce->bte", spatial, params["w_fuse_spatial"])
             + jnp.einsum("btc,ce->bte", temporal, params["w_fuse_temporal"])
             + params["b_fuse"][0])
    return _gelu(fused)


if __name__ == "__main__":
    key = jax.random.PRNGKey(0)
    kx, kp = jax.random.split(key)

    # Small shapes consistent with the module: video latent [B, T, C, H, W].
    B, T, C, H, W = 2, 8, 4, 16, 16          # batch=2, frames=8, channels(input_dim)=4, spatial=16
    E = 128                                   # embedding_dim; multiple of 128 -> lane-dense output stores

    x = jax.random.normal(kx, (B, T, C, H, W), dtype=jnp.float32)
    params = init_params(kp, C, E, T)

    out = hierarchical_motion_encoder_forward(x, params)
    out = jax.block_until_ready(out)

    ref = _reference_forward(x, params)
    assert out.shape == (B, T, E)
    assert jnp.allclose(out, ref, rtol=1e-3, atol=1e-3), float(jnp.max(jnp.abs(out - ref)))

    print("KERNEL_OK")
</pallas_src>

<mosaic_0001>
module attributes {stable_mosaic.version = 11 : i64} {
  func.func @_hme_kernel(%arg0: i32, %arg1: memref<1x4x2048xf32, #tpu.memory_space<vmem>>, %arg2: memref<8x2048xf32, #tpu.memory_space<vmem>>, %arg3: memref<4x4xf32, #tpu.memory_space<vmem>>, %arg4: memref<4x1xf32, #tpu.memory_space<vmem>>, %arg5: memref<3x8x8xf32, #tpu.memory_space<vmem>>, %arg6: memref<3x4x4xf32, #tpu.memory_space<vmem>>, %arg7: memref<1x4xf32, #tpu.memory_space<vmem>>, %arg8: memref<4x128xf32, #tpu.memory_space<vmem>>, %arg9: memref<4x128xf32, #tpu.memory_space<vmem>>, %arg10: memref<1x128xf32, #tpu.memory_space<vmem>>, %arg11: memref<1x8x128xf32, #tpu.memory_space<vmem>>) attributes {dimension_semantics = [#tpu.dimension_semantics<parallel>], iteration_bounds = array<i64: 2>, scalar_prefetch = 0 : i64, scratch_operands = 0 : i64, tpu.core_type = #tpu.core_type<tc>, window_params = [{transform_indices = @transform_0, window_bounds = array<i64: 1, 4, 2048>}, {pipeline_mode = #tpu.pipeline_mode<synchronous>, transform_indices = @transform_1, window_bounds = array<i64: 8, 2048>}, {pipeline_mode = #tpu.pipeline_mode<synchronous>, transform_indices = @transform_2, window_bounds = array<i64: 4, 4>}, {pipeline_mode = #tpu.pipeline_mode<synchronous>, transform_indices = @transform_3, window_bounds = array<i64: 4, 1>}, {pipeline_mode = #tpu.pipeline_mode<synchronous>, transform_indices = @transform_4, window_bounds = array<i64: 3, 8, 8>}, {pipeline_mode = #tpu.pipeline_mode<synchronous>, transform_indices = @transform_5, window_bounds = array<i64: 3, 4, 4>}, {pipeline_mode = #tpu.pipeline_mode<synchronous>, transform_indices = @transform_6, window_bounds = array<i64: 1, 4>}, {pipeline_mode = #tpu.pipeline_mode<synchronous>, transform_indices = @transform_7, window_bounds = array<i64: 4, 128>}, {pipeline_mode = #tpu.pipeline_mode<synchronous>, transform_indices = @transform_8, window_bounds = array<i64: 4, 128>}, {pipeline_mode = #tpu.pipeline_mode<synchronous>, transform_indices = @transform_9, window_bounds = array<i64: 1, 128>}, {transform_indices = @transform_10, window_bounds = array<i64: 1, 8, 128>}]} {
    %c0 = arith.constant 0 : index
    %c0_0 = arith.constant 0 : index
    %c0_1 = arith.constant 0 : index
    %0 = vector.load %arg1[%c0, %c0_0, %c0_1] : memref<1x4x2048xf32, #tpu.memory_space<vmem>>, vector<1x4x2048xf32>
    %1 = vector.shape_cast %0 : vector<1x4x2048xf32> to vector<4x2048xf32>
    %c0_2 = arith.constant 0 : index
    %c0_3 = arith.constant 0 : index
    %2 = vector.load %arg2[%c0_2, %c0_3] : memref<8x2048xf32, #tpu.memory_space<vmem>>, vector<8x2048xf32>
    %c0_4 = arith.constant 0 : index
    %c0_5 = arith.constant 0 : index
    %3 = vector.load %arg3[%c0_4, %c0_5] : memref<4x4xf32, #tpu.memory_space<vmem>>, vector<4x4xf32>
    %cst = arith.constant dense<0.000000e+00> : vector<4x2048xf32>
    %4 = tpu.matmul %3, %1, %cst {dimension_numbers = #tpu.dot_dimension_numbers<[1], [0], [0], [1], [0, 0, 1, 1], [], []>} : vector<4x4xf32>, vector<4x2048xf32>, vector<4x2048xf32> -> vector<4x2048xf32>
    %c0_6 = arith.constant 0 : index
    %c0_7 = arith.constant 0 : index
    %5 = vector.load %arg4[%c0_6, %c0_7] : memref<4x1xf32, #tpu.memory_space<vmem>>, vector<4x1xf32>
    %6 = vector.broadcast %5 : vector<4x1xf32> to vector<4x2048xf32>
    %7 = arith.addf %4, %6 : vector<4x2048xf32>
    %cst_8 = arith.constant 5.000000e-01 : f32
    %8 = vector.broadcast %cst_8 : f32 to vector<4x2048xf32>
    %9 = arith.mulf %8, %7 : vector<4x2048xf32>
    %cst_9 = arith.constant 4.471500e-02 : f32
    %10 = vector.broadcast %cst_9 : f32 to vector<4x2048xf32>
    %11 = arith.mulf %10, %7 : vector<4x2048xf32>
    %12 = arith.mulf %11, %7 : vector<4x2048xf32>
    %13 = arith.mulf %12, %7 : vector<4x2048xf32>
    %14 = arith.addf %7, %13 : vector<4x2048xf32>
    %cst_10 = arith.constant 0.797884583 : f32
    %15 = vector.broadcast %cst_10 : f32 to vector<4x2048xf32>
    %16 = arith.mulf %15, %14 : vector<4x2048xf32>
    %17 = math.tanh %16 : vector<4x2048xf32>
    %cst_11 = arith.constant 1.000000e+00 : f32
    %18 = vector.broadcast %cst_11 : f32 to vector<4x2048xf32>
    %19 = arith.addf %18, %17 : vector<4x2048xf32>
    %20 = arith.mulf %9, %19 : vector<4x2048xf32>
    %cst_12 = arith.constant dense<0.000000e+00> : vector<8x4xf32>
    %21 = tpu.matmul %2, %20, %cst_12 {dimension_numbers = #tpu.dot_dimension_numbers<[1], [1], [0], [0], [0, 0, 1, 0], [], []>} : vector<8x2048xf32>, vector<4x2048xf32>, vector<8x4xf32> -> vector<8x4xf32>
    %cst_13 = arith.constant dense<0.000000e+00> : vector<8x4xf32>
    %22 = tpu.matmul %2, %1, %cst_13 {dimension_numbers = #tpu.dot_dimension_numbers<[1], [1], [0], [0], [0, 0, 1, 0], [], []>} : vector<8x2048xf32>, vector<4x2048xf32>, vector<8x4xf32> -> vector<8x4xf32>
    %cst_14 = arith.constant 0.000000e+00 : f32
    %23 = vector.broadcast %cst_14 : f32 to vector<8x4xf32>
    %c0_15 = arith.constant 0 : index
    %c0_16 = arith.constant 0 : index
    %c0_17 = arith.constant 0 : index
    %24 = vector.load %arg5[%c0_15, %c0_16, %c0_17] : memref<3x8x8xf32, #tpu.memory_space<vmem>>, vector<1x8x8xf32>
    %25 = vector.shape_cast %24 : vector<1x8x8xf32> to vector<8x8xf32>
    %cst_18 = arith.constant dense<0.000000e+00> : vector<8x4xf32>
    %26 = tpu.matmul %25, %22, %cst_18 {dimension_numbers = #tpu.dot_dimension_numbers<[1], [0], [0], [1], [0, 0, 1, 1], [], []>} : vector<8x8xf32>, vector<8x4xf32>, vector<8x4xf32> -> vector<8x4xf32>
    %c0_19 = arith.constant 0 : index
    %c0_20 = arith.constant 0 : index
    %c0_21 = arith.constant 0 : index
    %27 = vector.load %arg6[%c0_19, %c0_20, %c0_21] : memref<3x4x4xf32, #tpu.memory_space<vmem>>, vector<1x4x4xf32>
    %28 = vector.shape_cast %27 : vector<1x4x4xf32> to vector<4x4xf32>
    %cst_22 = arith.constant dense<0.000000e+00> : vector<8x4xf32>
    %29 = tpu.matmul %26, %28, %cst_22 {dimension_numbers = #tpu.dot_dimension_numbers<[1], [0], [0], [1], [0, 0, 1, 1], [], []>} : vector<8x4xf32>, vector<4x4xf32>, vector<8x4xf32> -> vector<8x4xf32>
    %30 = arith.addf %23, %29 : vector<8x4xf32>
    %c1 = arith.constant 1 : index
    %c0_23 = arith.constant 0 : index
    %c0_24 = arith.constant 0 : index
    %31 = vector.load %arg5[%c1, %c0_23, %c0_24] : memref<3x8x8xf32, #tpu.memory_space<vmem>>, vector<1x8x8xf32>
    %32 = vector.shape_cast %31 : vector<1x8x8xf32> to vector<8x8xf32>
    %cst_25 = arith.constant dense<0.000000e+00> : vector<8x4xf32>
    %33 = tpu.matmul %32, %22, %cst_25 {dimension_numbers = #tpu.dot_dimension_numbers<[1], [0], [0], [1], [0, 0, 1, 1], [], []>} : vector<8x8xf32>, vector<8x4xf32>, vector<8x4xf32> -> vector<8x4xf32>
    %c1_26 = arith.constant 1 : index
    %c0_27 = arith.constant 0 : index
    %c0_28 = arith.constant 0 : index
    %34 = vector.load %arg6[%c1_26, %c0_27, %c0_28] : memref<3x4x4xf32, #tpu.memory_space<vmem>>, vector<1x4x4xf32>
    %35 = vector.shape_cast %34 : vector<1x4x4xf32> to vector<4x4xf32>
    %cst_29 = arith.constant dense<0.000000e+00> : vector<8x4xf32>
    %36 = tpu.matmul %33, %35, %cst_29 {dimension_numbers = #tpu.dot_dimension_numbers<[1], [0], [0], [1], [0, 0, 1, 1], [], []>} : vector<8x4xf32>, vector<4x4xf32>, vector<8x4xf32> -> vector<8x4xf32>
    %37 = arith.addf %30, %36 : vector<8x4xf32>
    %c2 = arith.constant 2 : index
    %c0_30 = arith.constant 0 : index
    %c0_31 = arith.constant 0 : index
    %38 = vector.load %arg5[%c2, %c0_30, %c0_31] : memref<3x8x8xf32, #tpu.memory_space<vmem>>, vector<1x8x8xf32>
    %39 = vector.shape_cast %38 : vector<1x8x8xf32> to vector<8x8xf32>
    %cst_32 = arith.constant dense<0.000000e+00> : vector<8x4xf32>
    %40 = tpu.matmul %39, %22, %cst_32 {dimension_numbers = #tpu.dot_dimension_numbers<[1], [0], [0], [1], [0, 0, 1, 1], [], []>} : vector<8x8xf32>, vector<8x4xf32>, vector<8x4xf32> -> vector<8x4xf32>
    %c2_33 = arith.constant 2 : index
    %c0_34 = arith.constant 0 : index
    %c0_35 = arith.constant 0 : index
    %41 = vector.load %arg6[%c2_33, %c0_34, %c0_35] : memref<3x4x4xf32, #tpu.memory_space<vmem>>, vector<1x4x4xf32>
    %42 = vector.shape_cast %41 : vector<1x4x4xf32> to vector<4x4xf32>
    %cst_36 = arith.constant dense<0.000000e+00> : vector<8x4xf32>
    %43 = tpu.matmul %40, %42, %cst_36 {dimension_numbers = #tpu.dot_dimension_numbers<[1], [0], [0], [1], [0, 0, 1, 1], [], []>} : vector<8x4xf32>, vector<4x4xf32>, vector<8x4xf32> -> vector<8x4xf32>
    %44 = arith.addf %37, %43 : vector<8x4xf32>
    %c0_37 = arith.constant 0 : index
    %c0_38 = arith.constant 0 : index
    %45 = vector.load %arg7[%c0_37, %c0_38] : memref<1x4xf32, #tpu.memory_space<vmem>>, vector<1x4xf32>
    %46 = vector.broadcast %45 : vector<1x4xf32> to vector<8x4xf32>
    %47 = arith.addf %44, %46 : vector<8x4xf32>
    %cst_39 = arith.constant 5.000000e-01 : f32
    %48 = vector.broadcast %cst_39 : f32 to vector<8x4xf32>
    %49 = arith.mulf %48, %47 : vector<8x4xf32>
    %cst_40 = arith.constant 4.471500e-02 : f32
    %50 = vector.broadcast %cst_40 : f32 to vector<8x4xf32>
    %51 = arith.mulf %50, %47 : vector<8x4xf32>
    %52 = arith.mulf %51, %47 : vector<8x4xf32>
    %53 = arith.mulf %52, %47 : vector<8x4xf32>
    %54 = arith.addf %47, %53 : vector<8x4xf32>
    %cst_41 = arith.constant 0.797884583 : f32
    %55 = vector.broadcast %cst_41 : f32 to vector<8x4xf32>
    %56 = arith.mulf %55, %54 : vector<8x4xf32>
    %57 = math.tanh %56 : vector<8x4xf32>
    %cst_42 = arith.constant 1.000000e+00 : f32
    %58 = vector.broadcast %cst_42 : f32 to vector<8x4xf32>
    %59 = arith.addf %58, %57 : vector<8x4xf32>
    %60 = arith.mulf %49, %59 : vector<8x4xf32>
    %c0_43 = arith.constant 0 : index
    %c0_44 = arith.constant 0 : index
    %61 = vector.load %arg8[%c0_43, %c0_44] : memref<4x128xf32, #tpu.memory_space<vmem>>, vector<4x128xf32>
    %cst_45 = arith.constant dense<0.000000e+00> : vector<8x128xf32>
    %62 = tpu.matmul %21, %61, %cst_45 {dimension_numbers = #tpu.dot_dimension_numbers<[1], [0], [0], [1], [0, 0, 1, 1], [], []>} : vector<8x4xf32>, vector<4x128xf32>, vector<8x128xf32> -> vector<8x128xf32>
    %c0_46 = arith.constant 0 : index
    %c0_47 = arith.constant 0 : index
    %63 = vector.load %arg9[%c0_46, %c0_47] : memref<4x128xf32, #tpu.memory_space<vmem>>, vector<4x128xf32>
    %cst_48 = arith.constant dense<0.000000e+00> : vector<8x128xf32>
    %64 = tpu.matmul %60, %63, %cst_48 {dimension_numbers = #tpu.dot_dimension_numbers<[1], [0], [0], [1], [0, 0, 1, 1], [], []>} : vector<8x4xf32>, vector<4x128xf32>, vector<8x128xf32> -> vector<8x128xf32>
    %65 = arith.addf %62, %64 : vector<8x128xf32>
    %c0_49 = arith.constant 0 : index
    %c0_50 = arith.constant 0 : index
    %66 = vector.load %arg10[%c0_49, %c0_50] : memref<1x128xf32, #tpu.memory_space<vmem>>, vector<1x128xf32>
    %67 = vector.broadcast %66 : vector<1x128xf32> to vector<8x128xf32>
    %68 = arith.addf %65, %67 : vector<8x128xf32>
    %cst_51 = arith.constant 5.000000e-01 : f32
    %69 = vector.broadcast %cst_51 : f32 to vector<8x128xf32>
    %70 = arith.mulf %69, %68 : vector<8x128xf32>
    %cst_52 = arith.constant 4.471500e-02 : f32
    %71 = vector.broadcast %cst_52 : f32 to vector<8x128xf32>
    %72 = arith.mulf %71, %68 : vector<8x128xf32>
    %73 = arith.mulf %72, %68 : vector<8x128xf32>
    %74 = arith.mulf %73, %68 : vector<8x128xf32>
    %75 = arith.addf %68, %74 : vector<8x128xf32>
    %cst_53 = arith.constant 0.797884583 : f32
    %76 = vector.broadcast %cst_53 : f32 to vector<8x128xf32>
    %77 = arith.mulf %76, %75 : vector<8x128xf32>
    %78 = math.tanh %77 : vector<8x128xf32>
    %cst_54 = arith.constant 1.000000e+00 : f32
    %79 = vector.broadcast %cst_54 : f32 to vector<8x128xf32>
    %80 = arith.addf %79, %78 : vector<8x128xf32>
    %81 = arith.mulf %70, %80 : vector<8x128xf32>
    %c0_55 = arith.constant 0 : index
    %c0_56 = arith.constant 0 : index
    %c0_57 = arith.constant 0 : index
    %82 = vector.load %arg11[%c0_55, %c0_56, %c0_57] : memref<1x8x128xf32, #tpu.memory_space<vmem>>, vector<1x8x128xf32>
    %83 = vector.shape_cast %82 : vector<1x8x128xf32> to vector<8x128xf32>
    %84 = vector.shape_cast %81 : vector<8x128xf32> to vector<1x8x128xf32>
    tpu.vector_store %arg11[%c0_55, %c0_56, %c0_57], %84 {strides = array<i32>} : memref<1x8x128xf32, #tpu.memory_space<vmem>>, vector<1x8x128xf32>,
    return
  }
  func.func @transform_0(%arg0: i32) -> (i32, i32, i32) {
    %c0_i32 = arith.constant 0 : i32
    %c0_i32_0 = arith.constant 0 : i32
    %c0_i32_1 = arith.constant 0 : i32
    return %arg0, %c0_i32, %c0_i32_0 : i32, i32, i32
  }
  func.func @transform_1(%arg0: i32) -> (i32, i32) {
    %c0_i32 = arith.constant 0 : i32
    %c0_i32_0 = arith.constant 0 : i32
    %c0_i32_1 = arith.constant 0 : i32
    return %c0_i32, %c0_i32_0 : i32, i32
  }
  func.func @transform_2(%arg0: i32) -> (i32, i32) {
    %c0_i32 = arith.constant 0 : i32
    %c0_i32_0 = arith.constant 0 : i32
    %c0_i32_1 = arith.constant 0 : i32
    return %c0_i32, %c0_i32_0 : i32, i32
  }
  func.func @transform_3(%arg0: i32) -> (i32, i32) {
    %c0_i32 = arith.constant 0 : i32
    %c0_i32_0 = arith.constant 0 : i32
    %c0_i32_1 = arith.constant 0 : i32
    return %c0_i32, %c0_i32_0 : i32, i32
  }
  func.func @transform_4(%arg0: i32) -> (i32, i32, i32) {
    %c0_i32 = arith.constant 0 : i32
    %c0_i32_0 = arith.constant 0 : i32
    %c0_i32_1 = arith.constant 0 : i32
    %c0_i32_2 = arith.constant 0 : i32
    return %c0_i32, %c0_i32_0, %c0_i32_1 : i32, i32, i32
  }
  func.func @transform_5(%arg0: i32) -> (i32, i32, i32) {
    %c0_i32 = arith.constant 0 : i32
    %c0_i32_0 = arith.constant 0 : i32
    %c0_i32_1 = arith.constant 0 : i32
    %c0_i32_2 = arith.constant 0 : i32
    return %c0_i32, %c0_i32_0, %c0_i32_1 : i32, i32, i32
  }
  func.func @transform_6(%arg0: i32) -> (i32, i32) {
    %c0_i32 = arith.constant 0 : i32
    %c0_i32_0 = arith.constant 0 : i32
    %c0_i32_1 = arith.constant 0 : i32
    return %c0_i32, %c0_i32_0 : i32, i32
  }
  func.func @transform_7(%arg0: i32) -> (i32, i32) {
    %c0_i32 = arith.constant 0 : i32
    %c0_i32_0 = arith.constant 0 : i32
    %c0_i32_1 = arith.constant 0 : i32
    return %c0_i32, %c0_i32_0 : i32, i32
  }
  func.func @transform_8(%arg0: i32) -> (i32, i32) {
    %c0_i32 = arith.constant 0 : i32
    %c0_i32_0 = arith.constant 0 : i32
    %c0_i32_1 = arith.constant 0 : i32
    return %c0_i32, %c0_i32_0 : i32, i32
  }
  func.func @transform_9(%arg0: i32) -> (i32, i32) {
    %c0_i32 = arith.constant 0 : i32
    %c0_i32_0 = arith.constant 0 : i32
    %c0_i32_1 = arith.constant 0 : i32
    return %c0_i32, %c0_i32_0 : i32, i32
  }
  func.func @transform_10(%arg0: i32) -> (i32, i32, i32) {
    %c0_i32 = arith.constant 0 : i32
    %c0_i32_0 = arith.constant 0 : i32
    %c0_i32_1 = arith.constant 0 : i32
    return %arg0, %c0_i32, %c0_i32_0 : i32, i32, i32
  }
}

</mosaic_0001>

<llo_original>
// kernel: tpu_custom_call.1
$region0: #{tpu_custom_call.1}
  #allocation0 [shape = 'u32[]', space=smem, size = 0x4, offset = 0x4, fixed_abs, tag = 'smem constant byte address 0x4 - core index']
  #allocation1 [shape = 'u32[72,128]{1,0:T(1,128)}', space=vmem, size = 0x9000, scoped, tag = 'internal scratch']
  %s0 = inlined_call_operand.hbm [shape: f32[2,4,2048], index: 0, kind: input, shape index: {}]
  %s1 = inlined_call_operand.hbm [shape: f32[8,2048], index: 1, kind: input, shape index: {}]
  %s2 = inlined_call_operand.vmem [shape: f32[4,4], index: 2, kind: input, shape index: {}]
  %s3 = inlined_call_operand.vmem [shape: f32[4,1], index: 3, kind: input, shape index: {}]
  %s4 = inlined_call_operand.hbm [shape: f32[3,8,8], index: 4, kind: input, shape index: {}]
  %s5 = inlined_call_operand.hbm [shape: f32[3,4,4], index: 5, kind: input, shape index: {}]
  %s6 = inlined_call_operand.vmem [shape: f32[1,4], index: 6, kind: input, shape index: {}]
  %s7 = inlined_call_operand.vmem [shape: f32[4,128], index: 7, kind: input, shape index: {}]
  %s8 = inlined_call_operand.hbm [shape: f32[4,128], index: 8, kind: input, shape index: {}]
  %s9 = inlined_call_operand.vmem [shape: f32[1,128], index: 9, kind: input, shape index: {}]
  %s10 = inlined_call_operand.hbm [shape: f32[2,8,128], index: 10, kind: output, shape index: {}]
  %s11 = sld [smem:[#allocation0]]
  $region93: #{tpu_custom_call.1} parent=0
    _
  %s13 = ssub.s32 1, %s11
  %s14 = scalar_select 0, %s13, %s11
  $region1: #{tpu_custom_call.1} parent=0
    #allocation2 [shape = 'u8[65536]{0}', space=vmem, size = 0x10000, scoped, tag = 'input window, operand 0']
    #allocation3 [shape = 's32[2]{0}', space=sflag, size = 0x8, scoped, tag = 'scoped memory for tpu_custom_call.1']
    #allocation4 [shape = 's32[2]{0}', space=sflag, size = 0x8, scoped, tag = 'scoped memory for tpu_custom_call.1']
    #allocation5 [shape = 'u8[65536]{0}', space=vmem, size = 0x10000, scoped, tag = 'input window, operand 1, single buffered']
    #allocation6 [shape = 's32[1]{0}', space=sflag, size = 0x4, scoped, tag = 'scoped memory for tpu_custom_call.1']
    #allocation7 [shape = 'u8[12288]{0}', space=vmem, size = 0x3000, scoped, tag = 'input window, operand 4, single buffered']
    #allocation8 [shape = 'u8[6144]{0}', space=vmem, size = 0x1800, scoped, tag = 'input window, operand 5, single buffered']
    #allocation9 [shape = 's32[1]{0}', space=sflag, size = 0x4, scoped, tag = 'scoped memory for tpu_custom_call.1']
    #allocation10 [shape = 'u8[2048]{0}', space=vmem, size = 0x800, scoped, tag = 'input window, operand 8, single buffered']
    #allocation11 [shape = 'u8[8192]{0}', space=vmem, size = 0x2000, scoped, tag = 'output window, operand 0']
    %15 = vsyncpa [#allocation3], 0
    %s16 = scalar_lea.sflag [#allocation3], 1
    %17 = vsyncpa %s16, 0
    %18 = vsyncpa [#allocation6], 0
    %19 = vsyncpa [#allocation9], 0
    %20 = vsyncpa [#allocation4], 0
    %s21 = scalar_lea.sflag [#allocation4], 1
    %22 = vsyncpa %s21, 0
    loop: start=0, step=1, limit=4
    $region2: #{tpu_custom_call.1} parent=1 // loop_pre_header
      _
    $region3: #{tpu_custom_call.1} parent=1 // loop_header
      %s24 = sphi 0, %s28
      %p25 = scmp.ge.s32.totalorder %s24, 4
      %s34 = sphi 0, %s36
      %s37 = sphi 0, %s34
      %s38 = sphi 0, %s37
      %s54 = sphi 0, %s38
      %s58 = sphi 0, %s58
      %s60 = sphi 0, %s58
      %s61 = sphi 0, %s60
      %s75 = sphi 0, %s61
      %s79 = sphi 0, %s79
      %s81 = sphi 0, %s79
      %s82 = sphi 0, %s81
      %s96 = sphi 0, %s82
      %s100 = sphi 0, %s100
      %s102 = sphi 0, %s100
      %s103 = sphi 0, %s102
      %s117 = sphi 0, %s103
      %s121 = sphi 0, %s121
      %s123 = sphi 0, %s121
      %s124 = sphi 0, %s123
      %s138 = sphi 0, %s124
      %s142 = sphi 0, %s142
      %s144 = sphi 0, %s142
      %s145 = sphi 0, %s144
      %s159 = sphi 0, %s145
      %s163 = sphi 0, %s163
      %s165 = sphi 0, %s163
      %s166 = sphi 0, %s165
      %s180 = sphi 0, %s166
      %s184 = sphi 0, %s184
      %s186 = sphi 0, %s184
      %s187 = sphi 0, %s186
      %s201 = sphi 0, %s187
      %s205 = sphi 0, %s205
      %s207 = sphi 0, %s205
      %s208 = sphi 0, %s207
      %s222 = sphi 0, %s208
      %s226 = sphi 0, %s226
      %s228 = sphi 0, %s226
      %s229 = sphi 0, %s228
      %s243 = sphi 0, %s229
      %s249 = sphi 0, %s251
      %s252 = sphi 0, %s249
      %s253 = sphi 0, %s252
      %s269 = sphi 0, %s253
    $region4: #{tpu_custom_call.1} parent=1 // loop_header_branch
      %27 = sbr.rel (%p25) target = $region8
    $region5: #{tpu_custom_call.1} parent=1 // loop_body
      %s29 = ssub.s32 %s24, 1
      %s30 = ssub.s32 %s24, 2
      %s31 = sadd.s32 %s24, 1
      %s32 = ssub.s32 %s24, %s31
      %p33 = scmp.eq.s32.totalorder %s32, 0
      %s35 = sadd.s32 %s34, 1
      %s36 = scalar_select %p33, %s34, %s35
      %p39 = pneg %p33
      %p40 = scmp.eq.s32.totalorder %s24, 1
      %p41 = por %p39, %p40
      %p42 = scmp.ne.s32.totalorder %s34, %s37
      %p43 = scmp.eq.s32.totalorder %s24, 0
      %p44 = por %p42, %p43
      %p45 = scmp.ne.s32.totalorder %s34, %s37
      %p46 = scmp.eq.s32.totalorder %s29, 1
      %p47 = por %p45, %p46
      %p48 = scmp.ne.s32.totalorder %s37, %s38
      %p49 = scmp.eq.s32.totalorder %s29, 0
      %p50 = por %p48, %p49
      %p51 = scmp.ne.s32.totalorder %s37, %s38
      %p52 = scmp.eq.s32.totalorder %s30, 1
      %p53 = por %p51, %p52
      %p55 = scmp.ne.s32.totalorder %s38, %s54
      %p56 = scmp.eq.s32.totalorder %s30, 0
      %p57 = por %p55, %p56
      %s59 = sadd.s32 %s58, 1
      %p62 = scmp.eq.s32.totalorder %s24, 1
      %p63 = scmp.ne.s32.totalorder %s58, %s60
      %p64 = scmp.eq.s32.totalorder %s24, 0
      %p65 = por %p63, %p64
      %p66 = scmp.ne.s32.totalorder %s58, %s60
      %p67 = scmp.eq.s32.totalorder %s29, 1
      %p68 = por %p66, %p67
      %p69 = scmp.ne.s32.totalorder %s60, %s61
      %p70 = scmp.eq.s32.totalorder %s29, 0
      %p71 = por %p69, %p70
      %p72 = scmp.ne.s32.totalorder %s60, %s61
      %p73 = scmp.eq.s32.totalorder %s30, 1
      %p74 = por %p72, %p73
      %p76 = scmp.ne.s32.totalorder %s61, %s75
      %p77 = scmp.eq.s32.totalorder %s30, 0
      %p78 = por %p76, %p77
      %s80 = sadd.s32 %s79, 1
      %p83 = scmp.eq.s32.totalorder %s24, 1
      %p84 = scmp.ne.s32.totalorder %s79, %s81
      %p85 = scmp.eq.s32.totalorder %s24, 0
      %p86 = por %p84, %p85
      %p87 = scmp.ne.s32.totalorder %s79, %s81
      %p88 = scmp.eq.s32.totalorder %s29, 1
      %p89 = por %p87, %p88
      %p90 = scmp.ne.s32.totalorder %s81, %s82
      %p91 = scmp.eq.s32.totalorder %s29, 0
      %p92 = por %p90, %p91
      %p93 = scmp.ne.s32.totalorder %s81, %s82
      %p94 = scmp.eq.s32.totalorder %s30, 1
      %p95 = por %p93, %p94
      %p97 = scmp.ne.s32.totalorder %s82, %s96
      %p98 = scmp.eq.s32.totalorder %s30, 0
      %p99 = por %p97, %p98
      %s101 = sadd.s32 %s100, 1
      %p104 = scmp.eq.s32.totalorder %s24, 1
      %p105 = scmp.ne.s32.totalorder %s100, %s102
      %p106 = scmp.eq.s32.totalorder %s24, 0
      %p107 = por %p105, %p106
      %p108 = scmp.ne.s32.totalorder %s100, %s102
      %p109 = scmp.eq.s32.totalorder %s29, 1
      %p110 = por %p108, %p109
      %p111 = scmp.ne.s32.totalorder %s102, %s103
      %p112 = scmp.eq.s32.totalorder %s29, 0
      %p113 = por %p111, %p112
      %p114 = scmp.ne.s32.totalorder %s102, %s103
      %p115 = scmp.eq.s32.totalorder %s30, 1
      %p116 = por %p114, %p115
      %p118 = scmp.ne.s32.totalorder %s103, %s117
      %p119 = scmp.eq.s32.totalorder %s30, 0
      %p120 = por %p118, %p119
      %s122 = sadd.s32 %s121, 1
      %p125 = scmp.eq.s32.totalorder %s24, 1
      %p126 = scmp.ne.s32.totalorder %s121, %s123
      %p127 = scmp.eq.s32.totalorder %s24, 0
      %p128 = por %p126, %p127
      %p129 = scmp.ne.s32.totalorder %s121, %s123
      %p130 = scmp.eq.s32.totalorder %s29, 1
      %p131 = por %p129, %p130
      %p132 = scmp.ne.s32.totalorder %s123, %s124
      %p133 = scmp.eq.s32.totalorder %s29, 0
      %p134 = por %p132, %p133
      %p135 = scmp.ne.s32.totalorder %s123, %s124
      %p136 = scmp.eq.s32.totalorder %s30, 1
      %p137 = por %p135, %p136
      %p139 = scmp.ne.s32.totalorder %s124, %s138
      %p140 = scmp.eq.s32.totalorder %s30, 0
      %p141 = por %p139, %p140
      %s143 = sadd.s32 %s142, 1
      %p146 = scmp.eq.s32.totalorder %s24, 1
      %p147 = scmp.ne.s32.totalorder %s142, %s144
      %p148 = scmp.eq.s32.totalorder %s24, 0
      %p149 = por %p147, %p148
      %p150 = scmp.ne.s32.totalorder %s142, %s144
      %p151 = scmp.eq.s32.totalorder %s29, 1
      %p152 = por %p150, %p151
      %p153 = scmp.ne.s32.totalorder %s144, %s145
      %p154 = scmp.eq.s32.totalorder %s29, 0
      %p155 = por %p153, %p154
      %p156 = scmp.ne.s32.totalorder %s144, %s145
      %p157 = scmp.eq.s32.totalorder %s30, 1
      %p158 = por %p156, %p157
      %p160 = scmp.ne.s32.totalorder %s145, %s159
      %p161 = scmp.eq.s32.totalorder %s30, 0
      %p162 = por %p160, %p161
      %s164 = sadd.s32 %s163, 1
      %p167 = scmp.eq.s32.totalorder %s24, 1
      %p168 = scmp.ne.s32.totalorder %s163, %s165
      %p169 = scmp.eq.s32.totalorder %s24, 0
      %p170 = por %p168, %p169
      %p171 = scmp.ne.s32.totalorder %s163, %s165
      %p172 = scmp.eq.s32.totalorder %s29, 1
      %p173 = por %p171, %p172
      %p174 = scmp.ne.s32.totalorder %s165, %s166
      %p175 = scmp.eq.s32.totalorder %s29, 0
      %p176 = por %p174, %p175
      %p177 = scmp.ne.s32.totalorder %s165, %s166
      %p178 = scmp.eq.s32.totalorder %s30, 1
      %p179 = por %p177, %p178
      %p181 = scmp.ne.s32.totalorder %s166, %s180
      %p182 = scmp.eq.s32.totalorder %s30, 0
      %p183 = por %p181, %p182
      %s185 = sadd.s32 %s184, 1
      %p188 = scmp.eq.s32.totalorder %s24, 1
      %p189 = scmp.ne.s32.totalorder %s184, %s186
      %p190 = scmp.eq.s32.totalorder %s24, 0
      %p191 = por %p189, %p190
      %p192 = scmp.ne.s32.totalorder %s184, %s186
      %p193 = scmp.eq.s32.totalorder %s29, 1
      %p194 = por %p192, %p193
      %p195 = scmp.ne.s32.totalorder %s186, %s187
      %p196 = scmp.eq.s32.totalorder %s29, 0
      %p197 = por %p195, %p196
      %p198 = scmp.ne.s32.totalorder %s186, %s187
      %p199 = scmp.eq.s32.totalorder %s30, 1
      %p200 = por %p198, %p199
      %p202 = scmp.ne.s32.totalorder %s187, %s201
      %p203 = scmp.eq.s32.totalorder %s30, 0
      %p204 = por %p202, %p203
      %s206 = sadd.s32 %s205, 1
      %p209 = scmp.eq.s32.totalorder %s24, 1
      %p210 = scmp.ne.s32.totalorder %s205, %s207
      %p211 = scmp.eq.s32.totalorder %s24, 0
      %p212 = por %p210, %p211
      %p213 = scmp.ne.s32.totalorder %s205, %s207
      %p214 = scmp.eq.s32.totalorder %s29, 1
      %p215 = por %p213, %p214
      %p216 = scmp.ne.s32.totalorder %s207, %s208
      %p217 = scmp.eq.s32.totalorder %s29, 0
      %p218 = por %p216, %p217
      %p219 = scmp.ne.s32.totalorder %s207, %s208
      %p220 = scmp.eq.s32.totalorder %s30, 1
      %p221 = por %p219, %p220
      %p223 = scmp.ne.s32.totalorder %s208, %s222
      %p224 = scmp.eq.s32.totalorder %s30, 0
      %p225 = por %p223, %p224
      %s227 = sadd.s32 %s226, 1
      %p230 = scmp.eq.s32.totalorder %s24, 1
      %p231 = scmp.ne.s32.totalorder %s226, %s228
      %p232 = scmp.eq.s32.totalorder %s24, 0
      %p233 = por %p231, %p232
      %p234 = scmp.ne.s32.totalorder %s226, %s228
      %p235 = scmp.eq.s32.totalorder %s29, 1
      %p236 = por %p234, %p235
      %p237 = scmp.ne.s32.totalorder %s228, %s229
      %p238 = scmp.eq.s32.totalorder %s29, 0
      %p239 = por %p237, %p238
      %p240 = scmp.ne.s32.totalorder %s228, %s229
      %p241 = scmp.eq.s32.totalorder %s30, 1
      %p242 = por %p240, %p241
      %p244 = scmp.ne.s32.totalorder %s229, %s243
      %p245 = scmp.eq.s32.totalorder %s30, 0
      %p246 = por %p244, %p245
      %s247 = ssub.s32 %s24, %s31
      %p248 = scmp.eq.s32.totalorder %s247, 0
      %s250 = sadd.s32 %s249, 1
      %s251 = scalar_select %p248, %s249, %s250
      %p254 = pneg %p248
      %p255 = scmp.eq.s32.totalorder %s24, 1
      %p256 = por %p254, %p255
      %p257 = scmp.ne.s32.totalorder %s249, %s252
      %p258 = scmp.eq.s32.totalorder %s24, 0
      %p259 = por %p257, %p258
      %p260 = scmp.ne.s32.totalorder %s249, %s252
      %p261 = scmp.eq.s32.totalorder %s29, 1
      %p262 = por %p260, %p261
      %p263 = scmp.ne.s32.totalorder %s252, %s253
      %p264 = scmp.eq.s32.totalorder %s29, 0
      %p265 = por %p263, %p264
      %p266 = scmp.ne.s32.totalorder %s252, %s253
      %p267 = scmp.eq.s32.totalorder %s30, 1
      %p268 = por %p266, %p267
      %p270 = scmp.ne.s32.totalorder %s253, %s269
      %p271 = scmp.eq.s32.totalorder %s30, 0
      %p272 = por %p270, %p271
      %p273 = scmp.le.s32.totalorder 1, %s24
      %p274 = scmp.lt.s32.totalorder %s24, 3
      %p275 = pnand %p273, %p274
      %p276 = pneg %p275
      // Predicated region
      $region9: #{tpu_custom_call.1} parent=5 // pred_check
        _
      $region10: #{tpu_custom_call.1} parent=5 // pred_check_branch
        %278 = sbr.rel (%p275) target = $region12
      $region11: #{tpu_custom_call.1} parent=5 // pred_region
        %s279 = ssub.s32 %s24, 1
        // Predicated region
        $region13: #{tpu_custom_call.1} parent=11 // pred_check
          %p280 = pneg %p71
        $region14: #{tpu_custom_call.1} parent=11 // pred_check_branch
          %282 = sbr.rel (%p280) target = $region16
        $region15: #{tpu_custom_call.1} parent=11 // pred_region
          %284 = vsyncadd [#allocation6], 0
          %s286 = sshll.u32 %s1, 4
          %s287 = int_to_ptr.hbm [resolvable:$true] %s286
          %s288 = sshll.u32 [#allocation5], 4
          %s289 = int_to_ptr.vmem [resolvable:$true] %s288
          %291 = dma.hbm_to_vmem [thread:$0]  %s287, 2048, %s289, [#allocation6]
        $region16: #{tpu_custom_call.1} parent=11 // pred_fallthru
          _
        // Predicated region
        $region17: #{tpu_custom_call.1} parent=11 // pred_check
          %p292 = pneg %p92
        $region18: #{tpu_custom_call.1} parent=11 // pred_check_branch
          %294 = sbr.rel (%p292) target = $region20
        $region19: #{tpu_custom_call.1} parent=11 // pred_region
          _
        $region20: #{tpu_custom_call.1} parent=11 // pred_fallthru
          _
        // Predicated region
        $region21: #{tpu_custom_call.1} parent=11 // pred_check
          %p295 = pneg %p113
        $region22: #{tpu_custom_call.1} parent=11 // pred_check_branch
          %297 = sbr.rel (%p295) target = $region24
        $region23: #{tpu_custom_call.1} parent=11 // pred_region
          _
        $region24: #{tpu_custom_call.1} parent=11 // pred_fallthru
          _
        // Predicated region
        $region25: #{tpu_custom_call.1} parent=11 // pred_check
          %p298 = pneg %p134
        $region26: #{tpu_custom_call.1} parent=11 // pred_check_branch
          %300 = sbr.rel (%p298) target = $region28
        $region27: #{tpu_custom_call.1} parent=11 // pred_region
          %302 = vsyncadd [#allocation6], 0
          %s303 = sshll.u32 %s4, 4
          %s304 = int_to_ptr.hbm [resolvable:$true] %s303
          %s305 = sshll.u32 [#allocation7], 4
          %s306 = int_to_ptr.vmem [resolvable:$true] %s305
          %311 = dma.hbm_to_vmem [thread:$0]  %s304, 384, %s306, [#allocation6], 128, 128, 8
        $region28: #{tpu_custom_call.1} parent=11 // pred_fallthru
          _
        // Predicated region
        $region29: #{tpu_custom_call.1} parent=11 // pred_check
          %p312 = pneg %p155
        $region30: #{tpu_custom_call.1} parent=11 // pred_check_branch
          %314 = sbr.rel (%p312) target = $region32
        $region31: #{tpu_custom_call.1} parent=11 // pred_region
          %316 = vsyncadd [#allocation9], 0
          %s317 = sshll.u32 %s5, 4
          %s318 = int_to_ptr.hbm [resolvable:$true] %s317
          %s319 = sshll.u32 [#allocation8], 4
          %s320 = int_to_ptr.vmem [resolvable:$true] %s319
          %325 = dma.hbm_to_vmem [thread:$0]  %s318, 192, %s320, [#allocation9], 64, 64, 4
        $region32: #{tpu_custom_call.1} parent=11 // pred_fallthru
          _
        // Predicated region
        $region33: #{tpu_custom_call.1} parent=11 // pred_check
          %p326 = pneg %p176
        $region34: #{tpu_custom_call.1} parent=11 // pred_check_branch
          %328 = sbr.rel (%p326) target = $region36
        $region35: #{tpu_custom_call.1} parent=11 // pred_region
          _
        $region36: #{tpu_custom_call.1} parent=11 // pred_fallthru
          _
        // Predicated region
        $region37: #{tpu_custom_call.1} parent=11 // pred_check
          %p329 = pneg %p197
        $region38: #{tpu_custom_call.1} parent=11 // pred_check_branch
          %331 = sbr.rel (%p329) target = $region40
        $region39: #{tpu_custom_call.1} parent=11 // pred_region
          _
        $region40: #{tpu_custom_call.1} parent=11 // pred_fallthru
          _
        // Predicated region
        $region41: #{tpu_custom_call.1} parent=11 // pred_check
          %p332 = pneg %p218
        $region42: #{tpu_custom_call.1} parent=11 // pred_check_branch
          %334 = sbr.rel (%p332) target = $region44
        $region43: #{tpu_custom_call.1} parent=11 // pred_region
          %336 = vsyncadd [#allocation9], 0
          %s338 = sshll.u32 %s8, 4
          %s339 = int_to_ptr.hbm [resolvable:$true] %s338
          %s340 = sshll.u32 [#allocation10], 4
          %s341 = int_to_ptr.vmem [resolvable:$true] %s340
          %343 = dma.hbm_to_vmem [thread:$0]  %s339, 64, %s341, [#allocation9]
        $region44: #{tpu_custom_call.1} parent=11 // pred_fallthru
          _
        // Predicated region
        $region45: #{tpu_custom_call.1} parent=11 // pred_check
          %p344 = pneg %p239
        $region46: #{tpu_custom_call.1} parent=11 // pred_check_branch
          %346 = sbr.rel (%p344) target = $region48
        $region47: #{tpu_custom_call.1} parent=11 // pred_region
          _
        $region48: #{tpu_custom_call.1} parent=11 // pred_fallthru
          _
      $region12: #{tpu_custom_call.1} parent=5 // pred_fallthru
        _
      %p347 = scmp.lt.s32.totalorder %s24, 2
      // Predicated region
      $region49: #{tpu_custom_call.1} parent=5 // pred_check
        %p348 = pneg %p347
      $region50: #{tpu_custom_call.1} parent=5 // pred_check_branch
        %350 = sbr.rel (%p348) target = $region52
      $region51: #{tpu_custom_call.1} parent=5 // pred_region
        // Predicated region
        $region53: #{tpu_custom_call.1} parent=51 // pred_check
          %p351 = pneg %p44
        $region54: #{tpu_custom_call.1} parent=51 // pred_check_branch
          %353 = sbr.rel (%p351) target = $region56
        $region55: #{tpu_custom_call.1} parent=51 // pred_region
          %s354 = sand.u32 %s34, 1
          %s355 = scalar_lea.sflag [#allocation3], %s354
          %s356 = sand.u32 %s34, 1
          %s357 = smul.addr %s356, 64
          %s358 = scalar_lea.vmem [#allocation2], %s357
          %360 = vsyncadd %s355, 0
          %s361 = smul.addr %s24, 16
          %s362 = smul.addr %s361, 4
          %s363 = scalar_lea.hbm %s0, %s362
          %s365 = sshll.u32 %s363, 4
          %s366 = int_to_ptr.hbm [resolvable:$true] %s365
          %s367 = sshll.u32 %s358, 4
          %s368 = int_to_ptr.vmem [resolvable:$true] %s367
          %370 = dma.hbm_to_vmem [thread:$0]  %s366, 1024, %s368, %s355
        $region56: #{tpu_custom_call.1} parent=51 // pred_fallthru
          _
      $region52: #{tpu_custom_call.1} parent=5 // pred_fallthru
        _
      %p371 = scmp.le.s32.totalorder 1, %s24
      %p372 = scmp.lt.s32.totalorder %s24, 3
      %p373 = pnand %p371, %p372
      %p374 = pneg %p373
      // Predicated region
      $region57: #{tpu_custom_call.1} parent=5 // pred_check
        _
      $region58: #{tpu_custom_call.1} parent=5 // pred_check_branch
        %376 = sbr.rel (%p373) target = $region60
      $region59: #{tpu_custom_call.1} parent=5 // pred_region
        %s377 = ssub.s32 %s24, 1
        %s378 = sand.u32 %s37, 1
        %s379 = scalar_lea.sflag [#allocation3], %s378
        %s380 = sand.u32 %s37, 1
        %s381 = smul.addr %s380, 64
        %s382 = scalar_lea.vmem [#allocation2], %s381
        // Predicated region
        $region61: #{tpu_custom_call.1} parent=59 // pred_check
          %p383 = pneg %p50
        $region62: #{tpu_custom_call.1} parent=59 // pred_check_branch
          %385 = sbr.rel (%p383) target = $region64
        $region63: #{tpu_custom_call.1} parent=59 // pred_region
          %387 = dma.done %s379, 1024
        $region64: #{tpu_custom_call.1} parent=59 // pred_fallthru
          _
        // Predicated region
        $region65: #{tpu_custom_call.1} parent=59 // pred_check
          %p388 = pneg %p71
        $region66: #{tpu_custom_call.1} parent=59 // pred_check_branch
          %390 = sbr.rel (%p388) target = $region68
        $region67: #{tpu_custom_call.1} parent=59 // pred_region
          %392 = dma.done [#allocation6], 2048
        $region68: #{tpu_custom_call.1} parent=59 // pred_fallthru
          _
        // Predicated region
        $region69: #{tpu_custom_call.1} parent=59 // pred_check
          %p393 = pneg %p134
        $region70: #{tpu_custom_call.1} parent=59 // pred_check_branch
          %395 = sbr.rel (%p393) target = $region72
        $region71: #{tpu_custom_call.1} parent=59 // pred_region
          %397 = dma.done [#allocation6], 384
        $region72: #{tpu_custom_call.1} parent=59 // pred_fallthru
          _
        // Predicated region
        $region73: #{tpu_custom_call.1} parent=59 // pred_check
          %p398 = pneg %p155
        $region74: #{tpu_custom_call.1} parent=59 // pred_check_branch
          %400 = sbr.rel (%p398) target = $region76
        $region75: #{tpu_custom_call.1} parent=59 // pred_region
          %402 = dma.done [#allocation9], 192
        $region76: #{tpu_custom_call.1} parent=59 // pred_fallthru
          _
        // Predicated region
        $region77: #{tpu_custom_call.1} parent=59 // pred_check
          %p403 = pneg %p218
        $region78: #{tpu_custom_call.1} parent=59 // pred_check_branch
          %405 = sbr.rel (%p403) target = $region80
        $region79: #{tpu_custom_call.1} parent=59 // pred_region
          %407 = dma.done [#allocation9], 64
        $region80: #{tpu_custom_call.1} parent=59 // pred_fallthru
          _
        %s408 = sand.u32 %s37, 1
        %s409 = scalar_lea.sflag [#allocation3], %s408
        %s410 = sand.u32 %s37, 1
        %s411 = smul.addr %s410, 64
        %s412 = scalar_lea.vmem [#allocation2], %s411
        %p413 = pneg %p50
        %p414 = pneg %p47
        %p415 = pneg %p71
        %p416 = pneg %p68
        %p417 = pneg %p92
        %p418 = pneg %p89
        %p419 = pneg %p113
        %p420 = pneg %p110
        %p421 = pneg %p134
        %p422 = pneg %p131
        %p423 = pneg %p155
        %p424 = pneg %p152
        %p425 = pneg %p176
        %p426 = pneg %p173
        %p427 = pneg %p197
        %p428 = pneg %p194
        %p429 = pneg %p218
        %p430 = pneg %p215
        %p431 = pneg %p239
        %p432 = pneg %p236
        %p433 = pneg %p265
        %p434 = pneg %p262
        %s435 = sand.u32 %s252, 1
        %s436 = scalar_lea.sflag [#allocation4], %s435
        %s437 = sand.u32 %s252, 1
        %s438 = smul.addr %s437, 8
        %s439 = scalar_lea.vmem [#allocation11], %s438
        %v440 = vld [vmem:[%s382] sm:$0xff]
        %v441 = vld [vmem:[%s382 + $0x8] sm:$0xff]
        %v442 = vld [vmem:[%s382 + $0x10] sm:$0xff]
        %v443 = vld [vmem:[%s382 + $0x18] sm:$0xff]
        %v444 = vld [vmem:[%s382 + $0x20] sm:$0xff]
        %v445 = vld [vmem:[%s382 + $0x28] sm:$0xff]
        %v446 = vld [vmem:[%s382 + $0x30] sm:$0xff]
        %v447 = vld [vmem:[%s382 + $0x38] sm:$0xff]
        %v448 = vld [vmem:[#allocation5] sm:$0xff]
        %v449 = vld [vmem:[#allocation5 + $0x8] sm:$0xff]
        %v450 = vld [vmem:[#allocation5 + $0x10] sm:$0xff]
        %v451 = vld [vmem:[#allocation5 + $0x18] sm:$0xff]
        %v452 = vld [vmem:[#allocation5 + $0x20] sm:$0xff]
        %v453 = vld [vmem:[#allocation5 + $0x28] sm:$0xff]
        %v454 = vld [vmem:[#allocation5 + $0x30] sm:$0xff]
        %v455 = vld [vmem:[#allocation5 + $0x38] sm:$0xff]
        %v456 = vld [vmem:[#allocation5 + $0x40] sm:$0xff]
        %v457 = vld [vmem:[#allocation5 + $0x48] sm:$0xff]
        %v458 = vld [vmem:[#allocation5 + $0x50] sm:$0xff]
        %v459 = vld [vmem:[#allocation5 + $0x58] sm:$0xff]
        %v460 = vld [vmem:[#allocation5 + $0x60] sm:$0xff]
        %v461 = vld [vmem:[#allocation5 + $0x68] sm:$0xff]
        %v462 = vld [vmem:[#allocation5 + $0x70] sm:$0xff]
        %v463 = vld [vmem:[#allocation5 + $0x78] sm:$0xff]
        %v464 = vld [vmem:[%s2] sm:$0xf]
        %v465 = vld [vmem:[%s3] sm:$0xf]
        %467 = vset.pattern.permute.xlu0 0
        %468 = vperm.xlu0 %467, %v465
        %v469 = vpop.permute.xlu0 %468
        %479 = vst [vmem:[#allocation1] ss:$2 sm:$0xff] %v440
        %s480 = scalar_lea.vmem [#allocation1], 16
        %481 = vst [vmem:[%s480] ss:$2 sm:$0xff] %v441
        %s482 = scalar_lea.vmem [#allocation1], 32
        %483 = vst [vmem:[%s482] ss:$2 sm:$0xff] %v442
        %s484 = scalar_lea.vmem [#allocation1], 48
        %485 = vst [vmem:[%s484] ss:$2 sm:$0xff] %v443
        %v486 = vld.sshfl [vmem:[#allocation1] sm:$0xff pattern:$0x75316420]
        %v487 = vld.sshfl [vmem:[#allocation1 + $0x8] sm:$0xff pattern:$0x75316420]
        %v488 = vld.sshfl [vmem:[#allocation1 + $0x10] sm:$0xff pattern:$0x75316420]
        %v489 = vld.sshfl [vmem:[#allocation1 + $0x18] sm:$0xff pattern:$0x75316420]
        %v490 = vld.sshfl [vmem:[#allocation1 + $0x20] sm:$0xff pattern:$0x75316420]
        %v491 = vld.sshfl [vmem:[#allocation1 + $0x28] sm:$0xff pattern:$0x75316420]
        %v492 = vld.sshfl [vmem:[#allocation1 + $0x30] sm:$0xff pattern:$0x75316420]
        %v493 = vld.sshfl [vmem:[#allocation1 + $0x38] sm:$0xff pattern:$0x75316420]
        %494 = vst [vmem:[#allocation1] ss:$2 sm:$0xff] %v444
        %495 = vst [vmem:[%s480] ss:$2 sm:$0xff] %v445
        %496 = vst [vmem:[%s482] ss:$2 sm:$0xff] %v446
        %497 = vst [vmem:[%s484] ss:$2 sm:$0xff] %v447
        %v498 = vld.sshfl [vmem:[#allocation1] sm:$0xff pattern:$0x75316420]
        %v499 = vld.sshfl [vmem:[#allocation1 + $0x8] sm:$0xff pattern:$0x75316420]
        %v500 = vld.sshfl [vmem:[#allocation1 + $0x10] sm:$0xff pattern:$0x75316420]
        %v501 = vld.sshfl [vmem:[#allocation1 + $0x18] sm:$0xff pattern:$0x75316420]
        %v502 = vld.sshfl [vmem:[#allocation1 + $0x20] sm:$0xff pattern:$0x75316420]
        %v503 = vld.sshfl [vmem:[#allocation1 + $0x28] sm:$0xff pattern:$0x75316420]
        %v504 = vld.sshfl [vmem:[#allocation1 + $0x30] sm:$0xff pattern:$0x75316420]
        %v505 = vld.sshfl [vmem:[#allocation1 + $0x38] sm:$0xff pattern:$0x75316420]
        %vm506 = vcmask 31744
        %v508 = vsel %vm506, %v464, 0
        %vm510 = vcmask 1043456
        %v511 = vsel %vm510, %v486, 0
        %v513 = vsel %vm510, %v487, 0
        %v515 = vsel %vm510, %v488, 0
        %v517 = vsel %vm510, %v489, 0
        %v519 = vsel %vm510, %v490, 0
        %v521 = vsel %vm510, %v491, 0
        %v523 = vsel %vm510, %v492, 0
        %v525 = vsel %vm510, %v493, 0
        %v527 = vsel %vm510, %v498, 0
        %v529 = vsel %vm510, %v499, 0
        %v531 = vsel %vm510, %v500, 0
        %v533 = vsel %vm510, %v501, 0
        %v535 = vsel %vm510, %v502, 0
        %v537 = vsel %vm510, %v503, 0
        %v539 = vsel %vm510, %v504, 0
        %v541 = vsel %vm510, %v505, 0
        %543 = vmatpush.msra.mxu0 0.0
        %544 = vmatpush.msra.mxu0 0.0
        %545 = vmatpush.msra.mxu0 0.0
        %546 = vmatpush.msra.mxu0 0.0
        %547 = vmatpush.msra.mxu0 0.0
        %548 = vmatpush.msra.mxu0 0.0
        %549 = vmatpush.msra.mxu0 0.0
        %550 = vmatpush.msra.mxu0 0.0
        %551 = vmatpush.msra.mxu0 0.0
        %552 = vmatpush.msra.mxu0 0.0
        %553 = vmatpush.msra.mxu0 0.0
        %554 = vmatpush.msra.mxu0 0.0
        %555 = vmatpush.msra.mxu0 0.0
        %556 = vmatpush.msra.mxu0 0.0
        %557 = vmatpush.msra.mxu0 0.0
        %558 = vmatpush.msra.mxu0 %v511
        %559 = vmatmul.f32.gmra.mxu0 %v508
        %v560 = vpop.f32.mrf.mxu0
        %v561 = vadd.f32 %v469, %v560
        %562 = vdwg.mxu0
        %563 = vmatpush.msra.mxu0 0.0
        %564 = vmatpush.msra.mxu0 0.0
        %565 = vmatpush.msra.mxu0 0.0
        %566 = vmatpush.msra.mxu0 0.0
        %567 = vmatpush.msra.mxu0 0.0
        %568 = vmatpush.msra.mxu0 0.0
        %569 = vmatpush.msra.mxu0 0.0
        %570 = vmatpush.msra.mxu0 0.0
        %571 = vmatpush.msra.mxu0 0.0
        %572 = vmatpush.msra.mxu0 0.0
        %573 = vmatpush.msra.mxu0 0.0
        %574 = vmatpush.msra.mxu0 0.0
        %575 = vmatpush.msra.mxu0 0.0
        %576 = vmatpush.msra.mxu0 0.0
        %577 = vmatpush.msra.mxu0 0.0
        %578 = vmatpush.msra.mxu0 %v513
        %579 = vmatmul.f32.gmra.mxu0 %v508
        %v580 = vpop.f32.mrf.mxu0
        %v581 = vadd.f32 %v469, %v580
        %582 = vdwg.mxu0
        %583 = vmatpush.msra.mxu0 0.0
        %584 = vmatpush.msra.mxu0 0.0
        %585 = vmatpush.msra.mxu0 0.0
        %586 = vmatpush.msra.mxu0 0.0
        %587 = vmatpush.msra.mxu0 0.0
        %588 = vmatpush.msra.mxu0 0.0
        %589 = vmatpush.msra.mxu0 0.0
        %590 = vmatpush.msra.mxu0 0.0
        %591 = vmatpush.msra.mxu0 0.0
        %592 = vmatpush.msra.mxu0 0.0
        %593 = vmatpush.msra.mxu0 0.0
        %594 = vmatpush.msra.mxu0 0.0
        %595 = vmatpush.msra.mxu0 0.0
        %596 = vmatpush.msra.mxu0 0.0
        %597 = vmatpush.msra.mxu0 0.0
        %598 = vmatpush.msra.mxu0 %v515
        %599 = vmatmul.f32.gmra.mxu0 %v508
        %v600 = vpop.f32.mrf.mxu0
        %v601 = vadd.f32 %v469, %v600
        %602 = vdwg.mxu0
        %603 = vmatpush.msra.mxu0 0.0
        %604 = vmatpush.msra.mxu0 0.0
        %605 = vmatpush.msra.mxu0 0.0
        %606 = vmatpush.msra.mxu0 0.0
        %607 = vmatpush.msra.mxu0 0.0
        %608 = vmatpush.msra.mxu0 0.0
        %609 = vmatpush.msra.mxu0 0.0
        %610 = vmatpush.msra.mxu0 0.0
        %611 = vmatpush.msra.mxu0 0.0
        %612 = vmatpush.msra.mxu0 0.0
        %613 = vmatpush.msra.mxu0 0.0
        %614 = vmatpush.msra.mxu0 0.0
        %615 = vmatpush.msra.mxu0 0.0
        %616 = vmatpush.msra.mxu0 0.0
        %617 = vmatpush.msra.mxu0 0.0
        %618 = vmatpush.msra.mxu0 %v517
        %619 = vmatmul.f32.gmra.mxu0 %v508
        %v620 = vpop.f32.mrf.mxu0
        %v621 = vadd.f32 %v469, %v620
        %622 = vdwg.mxu0
        %623 = vmatpush.msra.mxu0 0.0
        %624 = vmatpush.msra.mxu0 0.0
        %625 = vmatpush.msra.mxu0 0.0
        %626 = vmatpush.msra.mxu0 0.0
        %627 = vmatpush.msra.mxu0 0.0
        %628 = vmatpush.msra.mxu0 0.0
        %629 = vmatpush.msra.mxu0 0.0
        %630 = vmatpush.msra.mxu0 0.0
        %631 = vmatpush.msra.mxu0 0.0
        %632 = vmatpush.msra.mxu0 0.0
        %633 = vmatpush.msra.mxu0 0.0
        %634 = vmatpush.msra.mxu0 0.0
        %635 = vmatpush.msra.mxu0 0.0
        %636 = vmatpush.msra.mxu0 0.0
        %637 = vmatpush.msra.mxu0 0.0
        %638 = vmatpush.msra.mxu0 %v519
        %639 = vmatmul.f32.gmra.mxu0 %v508
        %v640 = vpop.f32.mrf.mxu0
        %v641 = vadd.f32 %v469, %v640
        %642 = vdwg.mxu0
        %643 = vmatpush.msra.mxu0 0.0
        %644 = vmatpush.msra.mxu0 0.0
        %645 = vmatpush.msra.mxu0 0.0
        %646 = vmatpush.msra.mxu0 0.0
        %647 = vmatpush.msra.mxu0 0.0
        %648 = vmatpush.msra.mxu0 0.0
        %649 = vmatpush.msra.mxu0 0.0
        %650 = vmatpush.msra.mxu0 0.0
        %651 = vmatpush.msra.mxu0 0.0
        %652 = vmatpush.msra.mxu0 0.0
        %653 = vmatpush.msra.mxu0 0.0
        %654 = vmatpush.msra.mxu0 0.0
        %655 = vmatpush.msra.mxu0 0.0
        %656 = vmatpush.msra.mxu0 0.0
        %657 = vmatpush.msra.mxu0 0.0
        %658 = vmatpush.msra.mxu0 %v521
        %659 = vmatmul.f32.gmra.mxu0 %v508
        %v660 = vpop.f32.mrf.mxu0
        %v661 = vadd.f32 %v469, %v660
        %662 = vdwg.mxu0
        %663 = vmatpush.msra.mxu0 0.0
        %664 = vmatpush.msra.mxu0 0.0
        %665 = vmatpush.msra.mxu0 0.0
        %666 = vmatpush.msra.mxu0 0.0
        %667 = vmatpush.msra.mxu0 0.0
        %668 = vmatpush.msra.mxu0 0.0
        %669 = vmatpush.msra.mxu0 0.0
        %670 = vmatpush.msra.mxu0 0.0
        %671 = vmatpush.msra.mxu0 0.0
        %672 = vmatpush.msra.mxu0 0.0
        %673 = vmatpush.msra.mxu0 0.0
        %674 = vmatpush.msra.mxu0 0.0
        %675 = vmatpush.msra.mxu0 0.0
        %676 = vmatpush.msra.mxu0 0.0
        %677 = vmatpush.msra.mxu0 0.0
        %678 = vmatpush.msra.mxu0 %v523
        %679 = vmatmul.f32.gmra.mxu0 %v508
        %v680 = vpop.f32.mrf.mxu0
        %v681 = vadd.f32 %v469, %v680
        %682 = vdwg.mxu0
        %683 = vmatpush.msra.mxu0 0.0
        %684 = vmatpush.msra.mxu0 0.0
        %685 = vmatpush.msra.mxu0 0.0
        %686 = vmatpush.msra.mxu0 0.0
        %687 = vmatpush.msra.mxu0 0.0
        %688 = vmatpush.msra.mxu0 0.0
        %689 = vmatpush.msra.mxu0 0.0
        %690 = vmatpush.msra.mxu0 0.0
        %691 = vmatpush.msra.mxu0 0.0
        %692 = vmatpush.msra.mxu0 0.0
        %693 = vmatpush.msra.mxu0 0.0
        %694 = vmatpush.msra.mxu0 0.0
        %695 = vmatpush.msra.mxu0 0.0
        %696 = vmatpush.msra.mxu0 0.0
        %697 = vmatpush.msra.mxu0 0.0
        %698 = vmatpush.msra.mxu0 %v525
        %699 = vmatmul.f32.gmra.mxu0 %v508
        %v700 = vpop.f32.mrf.mxu0
        %v701 = vadd.f32 %v469, %v700
        %702 = vdwg.mxu0
        %703 = vmatpush.msra.mxu0 0.0
        %704 = vmatpush.msra.mxu0 0.0
        %705 = vmatpush.msra.mxu0 0.0
        %706 = vmatpush.msra.mxu0 0.0
        %707 = vmatpush.msra.mxu0 0.0
        %708 = vmatpush.msra.mxu0 0.0
        %709 = vmatpush.msra.mxu0 0.0
        %710 = vmatpush.msra.mxu0 0.0
        %711 = vmatpush.msra.mxu0 0.0
        %712 = vmatpush.msra.mxu0 0.0
        %713 = vmatpush.msra.mxu0 0.0
        %714 = vmatpush.msra.mxu0 0.0
        %715 = vmatpush.msra.mxu0 0.0
        %716 = vmatpush.msra.mxu0 0.0
        %717 = vmatpush.msra.mxu0 0.0
        %718 = vmatpush.msra.mxu0 %v527
        %719 = vmatmul.f32.gmra.mxu0 %v508
        %v720 = vpop.f32.mrf.mxu0
        %v721 = vadd.f32 %v469, %v720
        %722 = vdwg.mxu0
        %723 = vmatpush.msra.mxu0 0.0
        %724 = vmatpush.msra.mxu0 0.0
        %725 = vmatpush.msra.mxu0 0.0
        %726 = vmatpush.msra.mxu0 0.0
        %727 = vmatpush.msra.mxu0 0.0
        %728 = vmatpush.msra.mxu0 0.0
        %729 = vmatpush.msra.mxu0 0.0
        %730 = vmatpush.msra.mxu0 0.0
        %731 = vmatpush.msra.mxu0 0.0
        %732 = vmatpush.msra.mxu0 0.0
        %733 = vmatpush.msra.mxu0 0.0
        %734 = vmatpush.msra.mxu0 0.0
        %735 = vmatpush.msra.mxu0 0.0
        %736 = vmatpush.msra.mxu0 0.0
        %737 = vmatpush.msra.mxu0 0.0
        %738 = vmatpush.msra.mxu0 %v529
        %739 = vmatmul.f32.gmra.mxu0 %v508
        %v740 = vpop.f32.mrf.mxu0
        %v741 = vadd.f32 %v469, %v740
        %742 = vdwg.mxu0
        %743 = vmatpush.msra.mxu0 0.0
        %744 = vmatpush.msra.mxu0 0.0
        %745 = vmatpush.msra.mxu0 0.0
        %746 = vmatpush.msra.mxu0 0.0
        %747 = vmatpush.msra.mxu0 0.0
        %748 = vmatpush.msra.mxu0 0.0
        %749 = vmatpush.msra.mxu0 0.0
        %750 = vmatpush.msra.mxu0 0.0
        %751 = vmatpush.msra.mxu0 0.0
        %752 = vmatpush.msra.mxu0 0.0
        %753 = vmatpush.msra.mxu0 0.0
        %754 = vmatpush.msra.mxu0 0.0
        %755 = vmatpush.msra.mxu0 0.0
        %756 = vmatpush.msra.mxu0 0.0
        %757 = vmatpush.msra.mxu0 0.0
        %758 = vmatpush.msra.mxu0 %v531
        %759 = vmatmul.f32.gmra.mxu0 %v508
        %v760 = vpop.f32.mrf.mxu0
        %v761 = vadd.f32 %v469, %v760
        %762 = vdwg.mxu0
        %763 = vmatpush.msra.mxu0 0.0
        %764 = vmatpush.msra.mxu0 0.0
        %765 = vmatpush.msra.mxu0 0.0
        %766 = vmatpush.msra.mxu0 0.0
        %767 = vmatpush.msra.mxu0 0.0
        %768 = vmatpush.msra.mxu0 0.0
        %769 = vmatpush.msra.mxu0 0.0
        %770 = vmatpush.msra.mxu0 0.0
        %771 = vmatpush.msra.mxu0 0.0
        %772 = vmatpush.msra.mxu0 0.0
        %773 = vmatpush.msra.mxu0 0.0
        %774 = vmatpush.msra.mxu0 0.0
        %775 = vmatpush.msra.mxu0 0.0
        %776 = vmatpush.msra.mxu0 0.0
        %777 = vmatpush.msra.mxu0 0.0
        %778 = vmatpush.msra.mxu0 %v533
        %779 = vmatmul.f32.gmra.mxu0 %v508
        %v780 = vpop.f32.mrf.mxu0
        %v781 = vadd.f32 %v469, %v780
        %782 = vdwg.mxu0
        %783 = vmatpush.msra.mxu0 0.0
        %784 = vmatpush.msra.mxu0 0.0
        %785 = vmatpush.msra.mxu0 0.0
        %786 = vmatpush.msra.mxu0 0.0
        %787 = vmatpush.msra.mxu0 0.0
        %788 = vmatpush.msra.mxu0 0.0
        %789 = vmatpush.msra.mxu0 0.0
        %790 = vmatpush.msra.mxu0 0.0
        %791 = vmatpush.msra.mxu0 0.0
        %792 = vmatpush.msra.mxu0 0.0
        %793 = vmatpush.msra.mxu0 0.0
        %794 = vmatpush.msra.mxu0 0.0
        %795 = vmatpush.msra.mxu0 0.0
        %796 = vmatpush.msra.mxu0 0.0
        %797 = vmatpush.msra.mxu0 0.0
        %798 = vmatpush.msra.mxu0 %v535
        %799 = vmatmul.f32.gmra.mxu0 %v508
        %v800 = vpop.f32.mrf.mxu0
        %v801 = vadd.f32 %v469, %v800
        %802 = vdwg.mxu0
        %803 = vmatpush.msra.mxu0 0.0
        %804 = vmatpush.msra.mxu0 0.0
        %805 = vmatpush.msra.mxu0 0.0
        %806 = vmatpush.msra.mxu0 0.0
        %807 = vmatpush.msra.mxu0 0.0
        %808 = vmatpush.msra.mxu0 0.0
        %809 = vmatpush.msra.mxu0 0.0
        %810 = vmatpush.msra.mxu0 0.0
        %811 = vmatpush.msra.mxu0 0.0
        %812 = vmatpush.msra.mxu0 0.0
        %813 = vmatpush.msra.mxu0 0.0
        %814 = vmatpush.msra.mxu0 0.0
        %815 = vmatpush.msra.mxu0 0.0
        %816 = vmatpush.msra.mxu0 0.0
        %817 = vmatpush.msra.mxu0 0.0
        %818 = vmatpush.msra.mxu0 %v537
        %819 = vmatmul.f32.gmra.mxu0 %v508
        %v820 = vpop.f32.mrf.mxu0
        %v821 = vadd.f32 %v469, %v820
        %822 = vdwg.mxu0
        %823 = vmatpush.msra.mxu0 0.0
        %824 = vmatpush.msra.mxu0 0.0
        %825 = vmatpush.msra.mxu0 0.0
        %826 = vmatpush.msra.mxu0 0.0
        %827 = vmatpush.msra.mxu0 0.0
        %828 = vmatpush.msra.mxu0 0.0
        %829 = vmatpush.msra.mxu0 0.0
        %830 = vmatpush.msra.mxu0 0.0
        %831 = vmatpush.msra.mxu0 0.0
        %832 = vmatpush.msra.mxu0 0.0
        %833 = vmatpush.msra.mxu0 0.0
        %834 = vmatpush.msra.mxu0 0.0
        %835 = vmatpush.msra.mxu0 0.0
        %836 = vmatpush.msra.mxu0 0.0
        %837 = vmatpush.msra.mxu0 0.0
        %838 = vmatpush.msra.mxu0 %v539
        %839 = vmatmul.f32.gmra.mxu0 %v508
        %v840 = vpop.f32.mrf.mxu0
        %v841 = vadd.f32 %v469, %v840
        %842 = vdwg.mxu0
        %843 = vmatpush.msra.mxu0 0.0
        %844 = vmatpush.msra.mxu0 0.0
        %845 = vmatpush.msra.mxu0 0.0
        %846 = vmatpush.msra.mxu0 0.0
        %847 = vmatpush.msra.mxu0 0.0
        %848 = vmatpush.msra.mxu0 0.0
        %849 = vmatpush.msra.mxu0 0.0
        %850 = vmatpush.msra.mxu0 0.0
        %851 = vmatpush.msra.mxu0 0.0
        %852 = vmatpush.msra.mxu0 0.0
        %853 = vmatpush.msra.mxu0 0.0
        %854 = vmatpush.msra.mxu0 0.0
        %855 = vmatpush.msra.mxu0 0.0
        %856 = vmatpush.msra.mxu0 0.0
        %857 = vmatpush.msra.mxu0 0.0
        %858 = vmatpush.msra.mxu0 %v541
        %859 = vmatmul.f32.gmra.mxu0 %v508
        %v860 = vpop.f32.mrf.mxu0
        %v861 = vadd.f32 %v469, %v860
        %862 = vdwg.mxu0
        %v863 = vmul.f32 %v561, 0.5
        %v864 = vmul.f32 %v581, 0.5
        %v865 = vmul.f32 %v601, 0.5
        %v866 = vmul.f32 %v621, 0.5
        %v867 = vmul.f32 %v641, 0.5
        %v868 = vmul.f32 %v661, 0.5
        %v869 = vmul.f32 %v681, 0.5
        %v870 = vmul.f32 %v701, 0.5
        %v871 = vmul.f32 %v721, 0.5
        %v872 = vmul.f32 %v741, 0.5
        %v873 = vmul.f32 %v761, 0.5
        %v874 = vmul.f32 %v781, 0.5
        %v875 = vmul.f32 %v801, 0.5
        %v876 = vmul.f32 %v821, 0.5
        %v877 = vmul.f32 %v841, 0.5
        %v878 = vmul.f32 %v861, 0.5
        %v879 = vmul.f32 %v561, 0.044715
        %v880 = vmul.f32 %v581, 0.044715
        %v881 = vmul.f32 %v601, 0.044715
        %v882 = vmul.f32 %v621, 0.044715
        %v883 = vmul.f32 %v641, 0.044715
        %v884 = vmul.f32 %v661, 0.044715
        %v885 = vmul.f32 %v681, 0.044715
        %v886 = vmul.f32 %v701, 0.044715
        %v887 = vmul.f32 %v721, 0.044715
        %v888 = vmul.f32 %v741, 0.044715
        %v889 = vmul.f32 %v761, 0.044715
        %v890 = vmul.f32 %v781, 0.044715
        %v891 = vmul.f32 %v801, 0.044715
        %v892 = vmul.f32 %v821, 0.044715
        %v893 = vmul.f32 %v841, 0.044715
        %v894 = vmul.f32 %v861, 0.044715
        %v895 = vmul.f32 %v879, %v561
        %v896 = vmul.f32 %v880, %v581
        %v897 = vmul.f32 %v881, %v601
        %v898 = vmul.f32 %v882, %v621
        %v899 = vmul.f32 %v883, %v641
        %v900 = vmul.f32 %v884, %v661
        %v901 = vmul.f32 %v885, %v681
        %v902 = vmul.f32 %v886, %v701
        %v903 = vmul.f32 %v887, %v721
        %v904 = vmul.f32 %v888, %v741
        %v905 = vmul.f32 %v889, %v761
        %v906 = vmul.f32 %v890, %v781
        %v907 = vmul.f32 %v891, %v801
        %v908 = vmul.f32 %v892, %v821
        %v909 = vmul.f32 %v893, %v841
        %v910 = vmul.f32 %v894, %v861
        %v911 = vmul.f32 %v895, %v561
        %v912 = vmul.f32 %v896, %v581
        %v913 = vmul.f32 %v897, %v601
        %v914 = vmul.f32 %v898, %v621
        %v915 = vmul.f32 %v899, %v641
        %v916 = vmul.f32 %v900, %v661
        %v917 = vmul.f32 %v901, %v681
        %v918 = vmul.f32 %v902, %v701
        %v919 = vmul.f32 %v903, %v721
        %v920 = vmul.f32 %v904, %v741
        %v921 = vmul.f32 %v905, %v761
        %v922 = vmul.f32 %v906, %v781
        %v923 = vmul.f32 %v907, %v801
        %v924 = vmul.f32 %v908, %v821
        %v925 = vmul.f32 %v909, %v841
        %v926 = vmul.f32 %v910, %v861
        %v927 = vadd.f32 %v561, %v911
        %v928 = vadd.f32 %v581, %v912
        %v929 = vadd.f32 %v601, %v913
        %v930 = vadd.f32 %v621, %v914
        %v931 = vadd.f32 %v641, %v915
        %v932 = vadd.f32 %v661, %v916
        %v933 = vadd.f32 %v681, %v917
        %v934 = vadd.f32 %v701, %v918
        %v935 = vadd.f32 %v721, %v919
        %v936 = vadd.f32 %v741, %v920
        %v937 = vadd.f32 %v761, %v921
        %v938 = vadd.f32 %v781, %v922
        %v939 = vadd.f32 %v801, %v923
        %v940 = vadd.f32 %v821, %v924
        %v941 = vadd.f32 %v841, %v925
        %v942 = vadd.f32 %v861, %v926
        %v943 = vmul.f32 %v927, 0.7978846
        %v944 = vmul.f32 %v928, 0.7978846
        %v945 = vmul.f32 %v929, 0.7978846
        %v946 = vmul.f32 %v930, 0.7978846
        %v947 = vmul.f32 %v931, 0.7978846
        %v948 = vmul.f32 %v932, 0.7978846
        %v949 = vmul.f32 %v933, 0.7978846
        %v950 = vmul.f32 %v934, 0.7978846
        %v951 = vmul.f32 %v935, 0.7978846
        %v952 = vmul.f32 %v936, 0.7978846
        %v953 = vmul.f32 %v937, 0.7978846
        %v954 = vmul.f32 %v938, 0.7978846
        %v955 = vmul.f32 %v939, 0.7978846
        %v956 = vmul.f32 %v940, 0.7978846
        %v957 = vmul.f32 %v941, 0.7978846
        %v958 = vmul.f32 %v942, 0.7978846
        %v959 = vtanh.pop %v943
        %v960 = vtanh.pop %v944
        %v961 = vtanh.pop %v945
        %v962 = vtanh.pop %v946
        %v963 = vtanh.pop %v947
        %v964 = vtanh.pop %v948
        %v965 = vtanh.pop %v949
        %v966 = vtanh.pop %v950
        %v967 = vtanh.pop %v951
        %v968 = vtanh.pop %v952
        %v969 = vtanh.pop %v953
        %v970 = vtanh.pop %v954
        %v971 = vtanh.pop %v955
        %v972 = vtanh.pop %v956
        %v973 = vtanh.pop %v957
        %v974 = vtanh.pop %v958
        %v975 = vadd.f32 %v959, 1.0
        %v976 = vadd.f32 %v960, 1.0
        %v977 = vadd.f32 %v961, 1.0
        %v978 = vadd.f32 %v962, 1.0
        %v979 = vadd.f32 %v963, 1.0
        %v980 = vadd.f32 %v964, 1.0
        %v981 = vadd.f32 %v965, 1.0
        %v982 = vadd.f32 %v966, 1.0
        %v983 = vadd.f32 %v967, 1.0
        %v984 = vadd.f32 %v968, 1.0
        %v985 = vadd.f32 %v969, 1.0
        %v986 = vadd.f32 %v970, 1.0
        %v987 = vadd.f32 %v971, 1.0
        %v988 = vadd.f32 %v972, 1.0
        %v989 = vadd.f32 %v973, 1.0
        %v990 = vadd.f32 %v974, 1.0
        %v991 = vmul.f32 %v863, %v975
        %v992 = vmul.f32 %v864, %v976
        %v993 = vmul.f32 %v865, %v977
        %v994 = vmul.f32 %v866, %v978
        %v995 = vmul.f32 %v867, %v979
        %v996 = vmul.f32 %v868, %v980
        %v997 = vmul.f32 %v869, %v981
        %v998 = vmul.f32 %v870, %v982
        %v999 = vmul.f32 %v871, %v983
        %v1000 = vmul.f32 %v872, %v984
        %v1001 = vmul.f32 %v873, %v985
        %v1002 = vmul.f32 %v874, %v986
        %v1003 = vmul.f32 %v875, %v987
        %v1004 = vmul.f32 %v876, %v988
        %v1005 = vmul.f32 %v877, %v989
        %v1006 = vmul.f32 %v878, %v990
        %1007 = vmatpush.xpose.msra.mxu0 0.0
        %1008 = vmatpush.xpose.msra.mxu0 0.0
        %1009 = vmatpush.xpose.msra.mxu0 0.0
        %1010 = vmatpush.xpose.msra.mxu0 0.0
        %1011 = vmatpush.xpose.msra.mxu0 0.0
        %1012 = vmatpush.xpose.msra.mxu0 0.0
        %1013 = vmatpush.xpose.msra.mxu0 0.0
        %1014 = vmatpush.xpose.msra.mxu0 0.0
        %1015 = vmatpush.xpose.msra.mxu0 0.0
        %1016 = vmatpush.xpose.msra.mxu0 0.0
        %1017 = vmatpush.xpose.msra.mxu0 0.0
        %1018 = vmatpush.xpose.msra.mxu0 0.0
        %1019 = vmatpush.xpose.msra.mxu0 0.0
        %1020 = vmatpush.xpose.msra.mxu0 0.0
        %1021 = vmatpush.xpose.msra.mxu0 0.0
        %1022 = vmatpush.xpose.msra.mxu0 %v991
        %1023 = vmatmul.f32.gmra.mxu0 %v448
        %v1024 = vpop.f32.mrf.mxu0
        %v1025 = vadd.f32 0.0, %v1024
        %1026 = vdwg.mxu0
        %1027 = vmatpush.xpose.msra.mxu0 0.0
        %1028 = vmatpush.xpose.msra.mxu0 0.0
        %1029 = vmatpush.xpose.msra.mxu0 0.0
        %1030 = vmatpush.xpose.msra.mxu0 0.0
        %1031 = vmatpush.xpose.msra.mxu0 0.0
        %1032 = vmatpush.xpose.msra.mxu0 0.0
        %1033 = vmatpush.xpose.msra.mxu0 0.0
        %1034 = vmatpush.xpose.msra.mxu0 0.0
        %1035 = vmatpush.xpose.msra.mxu0 0.0
        %1036 = vmatpush.xpose.msra.mxu0 0.0
        %1037 = vmatpush.xpose.msra.mxu0 0.0
        %1038 = vmatpush.xpose.msra.mxu0 0.0
        %1039 = vmatpush.xpose.msra.mxu0 0.0
        %1040 = vmatpush.xpose.msra.mxu0 0.0
        %1041 = vmatpush.xpose.msra.mxu0 0.0
        %1042 = vmatpush.xpose.msra.mxu0 %v992
        %1043 = vmatmul.f32.gmra.mxu0 %v449
        %v1044 = vpop.f32.mrf.mxu0
        %v1045 = vadd.f32 %v1025, %v1044
        %1046 = vdwg.mxu0
        %1047 = vmatpush.xpose.msra.mxu0 0.0
        %1048 = vmatpush.xpose.msra.mxu0 0.0
        %1049 = vmatpush.xpose.msra.mxu0 0.0
        %1050 = vmatpush.xpose.msra.mxu0 0.0
        %1051 = vmatpush.xpose.msra.mxu0 0.0
        %1052 = vmatpush.xpose.msra.mxu0 0.0
        %1053 = vmatpush.xpose.msra.mxu0 0.0
        %1054 = vmatpush.xpose.msra.mxu0 0.0
        %1055 = vmatpush.xpose.msra.mxu0 0.0
        %1056 = vmatpush.xpose.msra.mxu0 0.0
        %1057 = vmatpush.xpose.msra.mxu0 0.0
        %1058 = vmatpush.xpose.msra.mxu0 0.0
        %1059 = vmatpush.xpose.msra.mxu0 0.0
        %1060 = vmatpush.xpose.msra.mxu0 0.0
        %1061 = vmatpush.xpose.msra.mxu0 0.0
        %1062 = vmatpush.xpose.msra.mxu0 %v993
        %1063 = vmatmul.f32.gmra.mxu0 %v450
        %v1064 = vpop.f32.mrf.mxu0
        %v1065 = vadd.f32 %v1045, %v1064
        %1066 = vdwg.mxu0
        %1067 = vmatpush.xpose.msra.mxu0 0.0
        %1068 = vmatpush.xpose.msra.mxu0 0.0
        %1069 = vmatpush.xpose.msra.mxu0 0.0
        %1070 = vmatpush.xpose.msra.mxu0 0.0
        %1071 = vmatpush.xpose.msra.mxu0 0.0
        %1072 = vmatpush.xpose.msra.mxu0 0.0
        %1073 = vmatpush.xpose.msra.mxu0 0.0
        %1074 = vmatpush.xpose.msra.mxu0 0.0
        %1075 = vmatpush.xpose.msra.mxu0 0.0
        %1076 = vmatpush.xpose.msra.mxu0 0.0
        %1077 = vmatpush.xpose.msra.mxu0 0.0
        %1078 = vmatpush.xpose.msra.mxu0 0.0
        %1079 = vmatpush.xpose.msra.mxu0 0.0
        %1080 = vmatpush.xpose.msra.mxu0 0.0
        %1081 = vmatpush.xpose.msra.mxu0 0.0
        %1082 = vmatpush.xpose.msra.mxu0 %v994
        %1083 = vmatmul.f32.gmra.mxu0 %v451
        %v1084 = vpop.f32.mrf.mxu0
        %v1085 = vadd.f32 %v1065, %v1084
        %1086 = vdwg.mxu0
        %1087 = vmatpush.xpose.msra.mxu0 0.0
        %1088 = vmatpush.xpose.msra.mxu0 0.0
        %1089 = vmatpush.xpose.msra.mxu0 0.0
        %1090 = vmatpush.xpose.msra.mxu0 0.0
        %1091 = vmatpush.xpose.msra.mxu0 0.0
        %1092 = vmatpush.xpose.msra.mxu0 0.0
        %1093 = vmatpush.xpose.msra.mxu0 0.0
        %1094 = vmatpush.xpose.msra.mxu0 0.0
        %1095 = vmatpush.xpose.msra.mxu0 0.0
        %1096 = vmatpush.xpose.msra.mxu0 0.0
        %1097 = vmatpush.xpose.msra.mxu0 0.0
        %1098 = vmatpush.xpose.msra.mxu0 0.0
        %1099 = vmatpush.xpose.msra.mxu0 0.0
        %1100 = vmatpush.xpose.msra.mxu0 0.0
        %1101 = vmatpush.xpose.msra.mxu0 0.0
        %1102 = vmatpush.xpose.msra.mxu0 %v995
        %1103 = vmatmul.f32.gmra.mxu0 %v452
        %v1104 = vpop.f32.mrf.mxu0
        %v1105 = vadd.f32 %v1085, %v1104
        %1106 = vdwg.mxu0
        %1107 = vmatpush.xpose.msra.mxu0 0.0
        %1108 = vmatpush.xpose.msra.mxu0 0.0
        %1109 = vmatpush.xpose.msra.mxu0 0.0
        %1110 = vmatpush.xpose.msra.mxu0 0.0
        %1111 = vmatpush.xpose.msra.mxu0 0.0
        %1112 = vmatpush.xpose.msra.mxu0 0.0
        %1113 = vmatpush.xpose.msra.mxu0 0.0
        %1114 = vmatpush.xpose.msra.mxu0 0.0
        %1115 = vmatpush.xpose.msra.mxu0 0.0
        %1116 = vmatpush.xpose.msra.mxu0 0.0
        %1117 = vmatpush.xpose.msra.mxu0 0.0
        %1118 = vmatpush.xpose.msra.mxu0 0.0
        %1119 = vmatpush.xpose.msra.mxu0 0.0
        %1120 = vmatpush.xpose.msra.mxu0 0.0
        %1121 = vmatpush.xpose.msra.mxu0 0.0
        %1122 = vmatpush.xpose.msra.mxu0 %v996
        %1123 = vmatmul.f32.gmra.mxu0 %v453
        %v1124 = vpop.f32.mrf.mxu0
        %v1125 = vadd.f32 %v1105, %v1124
        %1126 = vdwg.mxu0
        %1127 = vmatpush.xpose.msra.mxu0 0.0
        %1128 = vmatpush.xpose.msra.mxu0 0.0
        %1129 = vmatpush.xpose.msra.mxu0 0.0
        %1130 = vmatpush.xpose.msra.mxu0 0.0
        %1131 = vmatpush.xpose.msra.mxu0 0.0
        %1132 = vmatpush.xpose.msra.mxu0 0.0
        %1133 = vmatpush.xpose.msra.mxu0 0.0
        %1134 = vmatpush.xpose.msra.mxu0 0.0
        %1135 = vmatpush.xpose.msra.mxu0 0.0
        %1136 = vmatpush.xpose.msra.mxu0 0.0
        %1137 = vmatpush.xpose.msra.mxu0 0.0
        %1138 = vmatpush.xpose.msra.mxu0 0.0
        %1139 = vmatpush.xpose.msra.mxu0 0.0
        %1140 = vmatpush.xpose.msra.mxu0 0.0
        %1141 = vmatpush.xpose.msra.mxu0 0.0
        %1142 = vmatpush.xpose.msra.mxu0 %v997
        %1143 = vmatmul.f32.gmra.mxu0 %v454
        %v1144 = vpop.f32.mrf.mxu0
        %v1145 = vadd.f32 %v1125, %v1144
        %1146 = vdwg.mxu0
        %1147 = vmatpush.xpose.msra.mxu0 0.0
        %1148 = vmatpush.xpose.msra.mxu0 0.0
        %1149 = vmatpush.xpose.msra.mxu0 0.0
        %1150 = vmatpush.xpose.msra.mxu0 0.0
        %1151 = vmatpush.xpose.msra.mxu0 0.0
        %1152 = vmatpush.xpose.msra.mxu0 0.0
        %1153 = vmatpush.xpose.msra.mxu0 0.0
        %1154 = vmatpush.xpose.msra.mxu0 0.0
        %1155 = vmatpush.xpose.msra.mxu0 0.0
        %1156 = vmatpush.xpose.msra.mxu0 0.0
        %1157 = vmatpush.xpose.msra.mxu0 0.0
        %1158 = vmatpush.xpose.msra.mxu0 0.0
        %1159 = vmatpush.xpose.msra.mxu0 0.0
        %1160 = vmatpush.xpose.msra.mxu0 0.0
        %1161 = vmatpush.xpose.msra.mxu0 0.0
        %1162 = vmatpush.xpose.msra.mxu0 %v998
        %1163 = vmatmul.f32.gmra.mxu0 %v455
        %v1164 = vpop.f32.mrf.mxu0
        %v1165 = vadd.f32 %v1145, %v1164
        %1166 = vdwg.mxu0
        %1167 = vmatpush.xpose.msra.mxu0 0.0
        %1168 = vmatpush.xpose.msra.mxu0 0.0
        %1169 = vmatpush.xpose.msra.mxu0 0.0
        %1170 = vmatpush.xpose.msra.mxu0 0.0
        %1171 = vmatpush.xpose.msra.mxu0 0.0
        %1172 = vmatpush.xpose.msra.mxu0 0.0
        %1173 = vmatpush.xpose.msra.mxu0 0.0
        %1174 = vmatpush.xpose.msra.mxu0 0.0
        %1175 = vmatpush.xpose.msra.mxu0 0.0
        %1176 = vmatpush.xpose.msra.mxu0 0.0
        %1177 = vmatpush.xpose.msra.mxu0 0.0
        %1178 = vmatpush.xpose.msra.mxu0 0.0
        %1179 = vmatpush.xpose.msra.mxu0 0.0
        %1180 = vmatpush.xpose.msra.mxu0 0.0
        %1181 = vmatpush.xpose.msra.mxu0 0.0
        %1182 = vmatpush.xpose.msra.mxu0 %v999
        %1183 = vmatmul.f32.gmra.mxu0 %v456
        %v1184 = vpop.f32.mrf.mxu0
        %v1185 = vadd.f32 %v1165, %v1184
        %1186 = vdwg.mxu0
        %1187 = vmatpush.xpose.msra.mxu0 0.0
        %1188 = vmatpush.xpose.msra.mxu0 0.0
        %1189 = vmatpush.xpose.msra.mxu0 0.0
        %1190 = vmatpush.xpose.msra.mxu0 0.0
        %1191 = vmatpush.xpose.msra.mxu0 0.0
        %1192 = vmatpush.xpose.msra.mxu0 0.0
        %1193 = vmatpush.xpose.msra.mxu0 0.0
        %1194 = vmatpush.xpose.msra.mxu0 0.0
        %1195 = vmatpush.xpose.msra.mxu0 0.0
        %1196 = vmatpush.xpose.msra.mxu0 0.0
        %1197 = vmatpush.xpose.msra.mxu0 0.0
        %1198 = vmatpush.xpose.msra.mxu0 0.0
        %1199 = vmatpush.xpose.msra.mxu0 0.0
        %1200 = vmatpush.xpose.msra.mxu0 0.0
        %1201 = vmatpush.xpose.msra.mxu0 0.0
        %1202 = vmatpush.xpose.msra.mxu0 %v1000
        %1203 = vmatmul.f32.gmra.mxu0 %v457
        %v1204 = vpop.f32.mrf.mxu0
        %v1205 = vadd.f32 %v1185, %v1204
        %1206 = vdwg.mxu0
        %1207 = vmatpush.xpose.msra.mxu0 0.0
        %1208 = vmatpush.xpose.msra.mxu0 0.0
        %1209 = vmatpush.xpose.msra.mxu0 0.0
        %1210 = vmatpush.xpose.msra.mxu0 0.0
        %1211 = vmatpush.xpose.msra.mxu0 0.0
        %1212 = vmatpush.xpose.msra.mxu0 0.0
        %1213 = vmatpush.xpose.msra.mxu0 0.0
        %1214 = vmatpush.xpose.msra.mxu0 0.0
        %1215 = vmatpush.xpose.msra.mxu0 0.0
        %1216 = vmatpush.xpose.msra.mxu0 0.0
        %1217 = vmatpush.xpose.msra.mxu0 0.0
        %1218 = vmatpush.xpose.msra.mxu0 0.0
        %1219 = vmatpush.xpose.msra.mxu0 0.0
        %1220 = vmatpush.xpose.msra.mxu0 0.0
        %1221 = vmatpush.xpose.msra.mxu0 0.0
        %1222 = vmatpush.xpose.msra.mxu0 %v1001
        %1223 = vmatmul.f32.gmra.mxu0 %v458
        %v1224 = vpop.f32.mrf.mxu0
        %v1225 = vadd.f32 %v1205, %v1224
        %1226 = vdwg.mxu0
        %1227 = vmatpush.xpose.msra.mxu0 0.0
        %1228 = vmatpush.xpose.msra.mxu0 0.0
        %1229 = vmatpush.xpose.msra.mxu0 0.0
        %1230 = vmatpush.xpose.msra.mxu0 0.0
        %1231 = vmatpush.xpose.msra.mxu0 0.0
        %1232 = vmatpush.xpose.msra.mxu0 0.0
        %1233 = vmatpush.xpose.msra.mxu0 0.0
        %1234 = vmatpush.xpose.msra.mxu0 0.0
        %1235 = vmatpush.xpose.msra.mxu0 0.0
        %1236 = vmatpush.xpose.msra.mxu0 0.0
        %1237 = vmatpush.xpose.msra.mxu0 0.0
        %1238 = vmatpush.xpose.msra.mxu0 0.0
        %1239 = vmatpush.xpose.msra.mxu0 0.0
        %1240 = vmatpush.xpose.msra.mxu0 0.0
        %1241 = vmatpush.xpose.msra.mxu0 0.0
        %1242 = vmatpush.xpose.msra.mxu0 %v1002
        %1243 = vmatmul.f32.gmra.mxu0 %v459
        %v1244 = vpop.f32.mrf.mxu0
        %v1245 = vadd.f32 %v1225, %v1244
        %1246 = vdwg.mxu0
        %1247 = vmatpush.xpose.msra.mxu0 0.0
        %1248 = vmatpush.xpose.msra.mxu0 0.0
        %1249 = vmatpush.xpose.msra.mxu0 0.0
        %1250 = vmatpush.xpose.msra.mxu0 0.0
        %1251 = vmatpush.xpose.msra.mxu0 0.0
        %1252 = vmatpush.xpose.msra.mxu0 0.0
        %1253 = vmatpush.xpose.msra.mxu0 0.0
        %1254 = vmatpush.xpose.msra.mxu0 0.0
        %1255 = vmatpush.xpose.msra.mxu0 0.0
        %1256 = vmatpush.xpose.msra.mxu0 0.0
        %1257 = vmatpush.xpose.msra.mxu0 0.0
        %1258 = vmatpush.xpose.msra.mxu0 0.0
        %1259 = vmatpush.xpose.msra.mxu0 0.0
        %1260 = vmatpush.xpose.msra.mxu0 0.0
        %1261 = vmatpush.xpose.msra.mxu0 0.0
        %1262 = vmatpush.xpose.msra.mxu0 %v1003
        %1263 = vmatmul.f32.gmra.mxu0 %v460
        %v1264 = vpop.f32.mrf.mxu0
        %v1265 = vadd.f32 %v1245, %v1264
        %1266 = vdwg.mxu0
        %1267 = vmatpush.xpose.msra.mxu0 0.0
        %1268 = vmatpush.xpose.msra.mxu0 0.0
        %1269 = vmatpush.xpose.msra.mxu0 0.0
        %1270 = vmatpush.xpose.msra.mxu0 0.0
        %1271 = vmatpush.xpose.msra.mxu0 0.0
        %1272 = vmatpush.xpose.msra.mxu0 0.0
        %1273 = vmatpush.xpose.msra.mxu0 0.0
        %1274 = vmatpush.xpose.msra.mxu0 0.0
        %1275 = vmatpush.xpose.msra.mxu0 0.0
        %1276 = vmatpush.xpose.msra.mxu0 0.0
        %1277 = vmatpush.xpose.msra.mxu0 0.0
        %1278 = vmatpush.xpose.msra.mxu0 0.0
        %1279 = vmatpush.xpose.msra.mxu0 0.0
        %1280 = vmatpush.xpose.msra.mxu0 0.0
        %1281 = vmatpush.xpose.msra.mxu0 0.0
        %1282 = vmatpush.xpose.msra.mxu0 %v1004
        %1283 = vmatmul.f32.gmra.mxu0 %v461
        %v1284 = vpop.f32.mrf.mxu0
        %v1285 = vadd.f32 %v1265, %v1284
        %1286 = vdwg.mxu0
        %1287 = vmatpush.xpose.msra.mxu0 0.0
        %1288 = vmatpush.xpose.msra.mxu0 0.0
        %1289 = vmatpush.xpose.msra.mxu0 0.0
        %1290 = vmatpush.xpose.msra.mxu0 0.0
        %1291 = vmatpush.xpose.msra.mxu0 0.0
        %1292 = vmatpush.xpose.msra.mxu0 0.0
        %1293 = vmatpush.xpose.msra.mxu0 0.0
        %1294 = vmatpush.xpose.msra.mxu0 0.0
        %1295 = vmatpush.xpose.msra.mxu0 0.0
        %1296 = vmatpush.xpose.msra.mxu0 0.0
        %1297 = vmatpush.xpose.msra.mxu0 0.0
        %1298 = vmatpush.xpose.msra.mxu0 0.0
        %1299 = vmatpush.xpose.msra.mxu0 0.0
        %1300 = vmatpush.xpose.msra.mxu0 0.0
        %1301 = vmatpush.xpose.msra.mxu0 0.0
        %1302 = vmatpush.xpose.msra.mxu0 %v1005
        %1303 = vmatmul.f32.gmra.mxu0 %v462
        %v1304 = vpop.f32.mrf.mxu0
        %v1305 = vadd.f32 %v1285, %v1304
        %1306 = vdwg.mxu0
        %1307 = vmatpush.xpose.msra.mxu0 0.0
        %1308 = vmatpush.xpose.msra.mxu0 0.0
        %1309 = vmatpush.xpose.msra.mxu0 0.0
        %1310 = vmatpush.xpose.msra.mxu0 0.0
        %1311 = vmatpush.xpose.msra.mxu0 0.0
        %1312 = vmatpush.xpose.msra.mxu0 0.0
        %1313 = vmatpush.xpose.msra.mxu0 0.0
        %1314 = vmatpush.xpose.msra.mxu0 0.0
        %1315 = vmatpush.xpose.msra.mxu0 0.0
        %1316 = vmatpush.xpose.msra.mxu0 0.0
        %1317 = vmatpush.xpose.msra.mxu0 0.0
        %1318 = vmatpush.xpose.msra.mxu0 0.0
        %1319 = vmatpush.xpose.msra.mxu0 0.0
        %1320 = vmatpush.xpose.msra.mxu0 0.0
        %1321 = vmatpush.xpose.msra.mxu0 0.0
        %1322 = vmatpush.xpose.msra.mxu0 %v1006
        %1323 = vmatmul.f32.gmra.mxu0 %v463
        %v1324 = vpop.f32.mrf.mxu0
        %v1325 = vadd.f32 %v1305, %v1324
        %1326 = vdwg.mxu0
        %1327 = vst [vmem:[#allocation1] ss:$2 sm:$0xff] %v440
        %s1328 = scalar_lea.vmem [#allocation1], 16
        %1329 = vst [vmem:[%s1328] ss:$2 sm:$0xff] %v441
        %s1330 = scalar_lea.vmem [#allocation1], 32
        %1331 = vst [vmem:[%s1330] ss:$2 sm:$0xff] %v442
        %s1332 = scalar_lea.vmem [#allocation1], 48
        %1333 = vst [vmem:[%s1332] ss:$2 sm:$0xff] %v443
        %v1334 = vld.sshfl [vmem:[#allocation1] sm:$0xff pattern:$0x75316420]
        %v1335 = vld.sshfl [vmem:[#allocation1 + $0x8] sm:$0xff pattern:$0x75316420]
        %v1336 = vld.sshfl [vmem:[#allocation1 + $0x10] sm:$0xff pattern:$0x75316420]
        %v1337 = vld.sshfl [vmem:[#allocation1 + $0x18] sm:$0xff pattern:$0x75316420]
        %v1338 = vld.sshfl [vmem:[#allocation1 + $0x20] sm:$0xff pattern:$0x75316420]
        %v1339 = vld.sshfl [vmem:[#allocation1 + $0x28] sm:$0xff pattern:$0x75316420]
        %v1340 = vld.sshfl [vmem:[#allocation1 + $0x30] sm:$0xff pattern:$0x75316420]
        %v1341 = vld.sshfl [vmem:[#allocation1 + $0x38] sm:$0xff pattern:$0x75316420]
        %1342 = vst [vmem:[#allocation1] ss:$2 sm:$0xff] %v444
        %1343 = vst [vmem:[%s1328] ss:$2 sm:$0xff] %v445
        %1344 = vst [vmem:[%s1330] ss:$2 sm:$0xff] %v446
        %1345 = vst [vmem:[%s1332] ss:$2 sm:$0xff] %v447
        %v1346 = vld.sshfl [vmem:[#allocation1] sm:$0xff pattern:$0x75316420]
        %v1347 = vld.sshfl [vmem:[#allocation1 + $0x8] sm:$0xff pattern:$0x75316420]
        %v1348 = vld.sshfl [vmem:[#allocation1 + $0x10] sm:$0xff pattern:$0x75316420]
        %v1349 = vld.sshfl [vmem:[#allocation1 + $0x18] sm:$0xff pattern:$0x75316420]
        %v1350 = vld.sshfl [vmem:[#allocation1 + $0x20] sm:$0xff pattern:$0x75316420]
        %v1351 = vld.sshfl [vmem:[#allocation1 + $0x28] sm:$0xff pattern:$0x75316420]
        %v1352 = vld.sshfl [vmem:[#allocation1 + $0x30] sm:$0xff pattern:$0x75316420]
        %v1353 = vld.sshfl [vmem:[#allocation1 + $0x38] sm:$0xff pattern:$0x75316420]
        %1370 = vmatpush.xpose.msra.mxu0 0.0
        %1371 = vmatpush.xpose.msra.mxu0 0.0
        %1372 = vmatpush.xpose.msra.mxu0 0.0
        %1373 = vmatpush.xpose.msra.mxu0 0.0
        %1374 = vmatpush.xpose.msra.mxu0 0.0
        %1375 = vmatpush.xpose.msra.mxu0 0.0
        %1376 = vmatpush.xpose.msra.mxu0 0.0
        %1377 = vmatpush.xpose.msra.mxu0 0.0
        %1378 = vmatpush.xpose.msra.mxu0 0.0
        %1379 = vmatpush.xpose.msra.mxu0 0.0
        %1380 = vmatpush.xpose.msra.mxu0 0.0
        %1381 = vmatpush.xpose.msra.mxu0 0.0
        %1382 = vmatpush.xpose.msra.mxu0 0.0
        %1383 = vmatpush.xpose.msra.mxu0 0.0
        %1384 = vmatpush.xpose.msra.mxu0 0.0
        %1385 = vmatpush.xpose.msra.mxu0 %v1334
        %1386 = vmatmul.f32.gmra.mxu0 %v448
        %v1387 = vpop.f32.mrf.mxu0
        %v1388 = vadd.f32 0.0, %v1387
        %1389 = vdwg.mxu0
        %1390 = vmatpush.xpose.msra.mxu0 0.0
        %1391 = vmatpush.xpose.msra.mxu0 0.0
        %1392 = vmatpush.xpose.msra.mxu0 0.0
        %1393 = vmatpush.xpose.msra.mxu0 0.0
        %1394 = vmatpush.xpose.msra.mxu0 0.0
        %1395 = vmatpush.xpose.msra.mxu0 0.0
        %1396 = vmatpush.xpose.msra.mxu0 0.0
        %1397 = vmatpush.xpose.msra.mxu0 0.0
        %1398 = vmatpush.xpose.msra.mxu0 0.0
        %1399 = vmatpush.xpose.msra.mxu0 0.0
        %1400 = vmatpush.xpose.msra.mxu0 0.0
        %1401 = vmatpush.xpose.msra.mxu0 0.0
        %1402 = vmatpush.xpose.msra.mxu0 0.0
        %1403 = vmatpush.xpose.msra.mxu0 0.0
        %1404 = vmatpush.xpose.msra.mxu0 0.0
        %1405 = vmatpush.xpose.msra.mxu0 %v1335
        %1406 = vmatmul.f32.gmra.mxu0 %v449
        %v1407 = vpop.f32.mrf.mxu0
        %v1408 = vadd.f32 %v1388, %v1407
        %1409 = vdwg.mxu0
        %1410 = vmatpush.xpose.msra.mxu0 0.0
        %1411 = vmatpush.xpose.msra.mxu0 0.0
        %1412 = vmatpush.xpose.msra.mxu0 0.0
        %1413 = vmatpush.xpose.msra.mxu0 0.0
        %1414 = vmatpush.xpose.msra.mxu0 0.0
        %1415 = vmatpush.xpose.msra.mxu0 0.0
        %1416 = vmatpush.xpose.msra.mxu0 0.0
        %1417 = vmatpush.xpose.msra.mxu0 0.0
        %1418 = vmatpush.xpose.msra.mxu0 0.0
        %1419 = vmatpush.xpose.msra.mxu0 0.0
        %1420 = vmatpush.xpose.msra.mxu0 0.0
        %1421 = vmatpush.xpose.msra.mxu0 0.0
        %1422 = vmatpush.xpose.msra.mxu0 0.0
        %1423 = vmatpush.xpose.msra.mxu0 0.0
        %1424 = vmatpush.xpose.msra.mxu0 0.0
        %1425 = vmatpush.xpose.msra.mxu0 %v1336
        %1426 = vmatmul.f32.gmra.mxu0 %v450
        %v1427 = vpop.f32.mrf.mxu0
        %v1428 = vadd.f32 %v1408, %v1427
        %1429 = vdwg.mxu0
        %1430 = vmatpush.xpose.msra.mxu0 0.0
        %1431 = vmatpush.xpose.msra.mxu0 0.0
        %1432 = vmatpush.xpose.msra.mxu0 0.0
        %1433 = vmatpush.xpose.msra.mxu0 0.0
        %1434 = vmatpush.xpose.msra.mxu0 0.0
        %1435 = vmatpush.xpose.msra.mxu0 0.0
        %1436 = vmatpush.xpose.msra.mxu0 0.0
        %1437 = vmatpush.xpose.msra.mxu0 0.0
        %1438 = vmatpush.xpose.msra.mxu0 0.0
        %1439 = vmatpush.xpose.msra.mxu0 0.0
        %1440 = vmatpush.xpose.msra.mxu0 0.0
        %1441 = vmatpush.xpose.msra.mxu0 0.0
        %1442 = vmatpush.xpose.msra.mxu0 0.0
        %1443 = vmatpush.xpose.msra.mxu0 0.0
        %1444 = vmatpush.xpose.msra.mxu0 0.0
        %1445 = vmatpush.xpose.msra.mxu0 %v1337
        %1446 = vmatmul.f32.gmra.mxu0 %v451
        %v1447 = vpop.f32.mrf.mxu0
        %v1448 = vadd.f32 %v1428, %v1447
        %1449 = vdwg.mxu0
        %1450 = vmatpush.xpose.msra.mxu0 0.0
        %1451 = vmatpush.xpose.msra.mxu0 0.0
        %1452 = vmatpush.xpose.msra.mxu0 0.0
        %1453 = vmatpush.xpose.msra.mxu0 0.0
        %1454 = vmatpush.xpose.msra.mxu0 0.0
        %1455 = vmatpush.xpose.msra.mxu0 0.0
        %1456 = vmatpush.xpose.msra.mxu0 0.0
        %1457 = vmatpush.xpose.msra.mxu0 0.0
        %1458 = vmatpush.xpose.msra.mxu0 0.0
        %1459 = vmatpush.xpose.msra.mxu0 0.0
        %1460 = vmatpush.xpose.msra.mxu0 0.0
        %1461 = vmatpush.xpose.msra.mxu0 0.0
        %1462 = vmatpush.xpose.msra.mxu0 0.0
        %1463 = vmatpush.xpose.msra.mxu0 0.0
        %1464 = vmatpush.xpose.msra.mxu0 0.0
        %1465 = vmatpush.xpose.msra.mxu0 %v1338
        %1466 = vmatmul.f32.gmra.mxu0 %v452
        %v1467 = vpop.f32.mrf.mxu0
        %v1468 = vadd.f32 %v1448, %v1467
        %1469 = vdwg.mxu0
        %1470 = vmatpush.xpose.msra.mxu0 0.0
        %1471 = vmatpush.xpose.msra.mxu0 0.0
        %1472 = vmatpush.xpose.msra.mxu0 0.0
        %1473 = vmatpush.xpose.msra.mxu0 0.0
        %1474 = vmatpush.xpose.msra.mxu0 0.0
        %1475 = vmatpush.xpose.msra.mxu0 0.0
        %1476 = vmatpush.xpose.msra.mxu0 0.0
        %1477 = vmatpush.xpose.msra.mxu0 0.0
        %1478 = vmatpush.xpose.msra.mxu0 0.0
        %1479 = vmatpush.xpose.msra.mxu0 0.0
        %1480 = vmatpush.xpose.msra.mxu0 0.0
        %1481 = vmatpush.xpose.msra.mxu0 0.0
        %1482 = vmatpush.xpose.msra.mxu0 0.0
        %1483 = vmatpush.xpose.msra.mxu0 0.0
        %1484 = vmatpush.xpose.msra.mxu0 0.0
        %1485 = vmatpush.xpose.msra.mxu0 %v1339
        %1486 = vmatmul.f32.gmra.mxu0 %v453
        %v1487 = vpop.f32.mrf.mxu0
        %v1488 = vadd.f32 %v1468, %v1487
        %1489 = vdwg.mxu0
        %1490 = vmatpush.xpose.msra.mxu0 0.0
        %1491 = vmatpush.xpose.msra.mxu0 0.0
        %1492 = vmatpush.xpose.msra.mxu0 0.0
        %1493 = vmatpush.xpose.msra.mxu0 0.0
        %1494 = vmatpush.xpose.msra.mxu0 0.0
        %1495 = vmatpush.xpose.msra.mxu0 0.0
        %1496 = vmatpush.xpose.msra.mxu0 0.0
        %1497 = vmatpush.xpose.msra.mxu0 0.0
        %1498 = vmatpush.xpose.msra.mxu0 0.0
        %1499 = vmatpush.xpose.msra.mxu0 0.0
        %1500 = vmatpush.xpose.msra.mxu0 0.0
        %1501 = vmatpush.xpose.msra.mxu0 0.0
        %1502 = vmatpush.xpose.msra.mxu0 0.0
        %1503 = vmatpush.xpose.msra.mxu0 0.0
        %1504 = vmatpush.xpose.msra.mxu0 0.0
        %1505 = vmatpush.xpose.msra.mxu0 %v1340
        %1506 = vmatmul.f32.gmra.mxu0 %v454
        %v1507 = vpop.f32.mrf.mxu0
        %v1508 = vadd.f32 %v1488, %v1507
        %1509 = vdwg.mxu0
        %1510 = vmatpush.xpose.msra.mxu0 0.0
        %1511 = vmatpush.xpose.msra.mxu0 0.0
        %1512 = vmatpush.xpose.msra.mxu0 0.0
        %1513 = vmatpush.xpose.msra.mxu0 0.0
        %1514 = vmatpush.xpose.msra.mxu0 0.0
        %1515 = vmatpush.xpose.msra.mxu0 0.0
        %1516 = vmatpush.xpose.msra.mxu0 0.0
        %1517 = vmatpush.xpose.msra.mxu0 0.0
        %1518 = vmatpush.xpose.msra.mxu0 0.0
        %1519 = vmatpush.xpose.msra.mxu0 0.0
        %1520 = vmatpush.xpose.msra.mxu0 0.0
        %1521 = vmatpush.xpose.msra.mxu0 0.0
        %1522 = vmatpush.xpose.msra.mxu0 0.0
        %1523 = vmatpush.xpose.msra.mxu0 0.0
        %1524 = vmatpush.xpose.msra.mxu0 0.0
        %1525 = vmatpush.xpose.msra.mxu0 %v1341
        %1526 = vmatmul.f32.gmra.mxu0 %v455
        %v1527 = vpop.f32.mrf.mxu0
        %v1528 = vadd.f32 %v1508, %v1527
        %1529 = vdwg.mxu0
        %1530 = vmatpush.xpose.msra.mxu0 0.0
        %1531 = vmatpush.xpose.msra.mxu0 0.0
        %1532 = vmatpush.xpose.msra.mxu0 0.0
        %1533 = vmatpush.xpose.msra.mxu0 0.0
        %1534 = vmatpush.xpose.msra.mxu0 0.0
        %1535 = vmatpush.xpose.msra.mxu0 0.0
        %1536 = vmatpush.xpose.msra.mxu0 0.0
        %1537 = vmatpush.xpose.msra.mxu0 0.0
        %1538 = vmatpush.xpose.msra.mxu0 0.0
        %1539 = vmatpush.xpose.msra.mxu0 0.0
        %1540 = vmatpush.xpose.msra.mxu0 0.0
        %1541 = vmatpush.xpose.msra.mxu0 0.0
        %1542 = vmatpush.xpose.msra.mxu0 0.0
        %1543 = vmatpush.xpose.msra.mxu0 0.0
        %1544 = vmatpush.xpose.msra.mxu0 0.0
        %1545 = vmatpush.xpose.msra.mxu0 %v1346
        %1546 = vmatmul.f32.gmra.mxu0 %v456
        %v1547 = vpop.f32.mrf.mxu0
        %v1548 = vadd.f32 %v1528, %v1547
        %1549 = vdwg.mxu0
        %1550 = vmatpush.xpose.msra.mxu0 0.0
        %1551 = vmatpush.xpose.msra.mxu0 0.0
        %1552 = vmatpush.xpose.msra.mxu0 0.0
        %1553 = vmatpush.xpose.msra.mxu0 0.0
        %1554 = vmatpush.xpose.msra.mxu0 0.0
        %1555 = vmatpush.xpose.msra.mxu0 0.0
        %1556 = vmatpush.xpose.msra.mxu0 0.0
        %1557 = vmatpush.xpose.msra.mxu0 0.0
        %1558 = vmatpush.xpose.msra.mxu0 0.0
        %1559 = vmatpush.xpose.msra.mxu0 0.0
        %1560 = vmatpush.xpose.msra.mxu0 0.0
        %1561 = vmatpush.xpose.msra.mxu0 0.0
        %1562 = vmatpush.xpose.msra.mxu0 0.0
        %1563 = vmatpush.xpose.msra.mxu0 0.0
        %1564 = vmatpush.xpose.msra.mxu0 0.0
        %1565 = vmatpush.xpose.msra.mxu0 %v1347
        %1566 = vmatmul.f32.gmra.mxu0 %v457
        %v1567 = vpop.f32.mrf.mxu0
        %v1568 = vadd.f32 %v1548, %v1567
        %1569 = vdwg.mxu0
        %1570 = vmatpush.xpose.msra.mxu0 0.0
        %1571 = vmatpush.xpose.msra.mxu0 0.0
        %1572 = vmatpush.xpose.msra.mxu0 0.0
        %1573 = vmatpush.xpose.msra.mxu0 0.0
        %1574 = vmatpush.xpose.msra.mxu0 0.0
        %1575 = vmatpush.xpose.msra.mxu0 0.0
        %1576 = vmatpush.xpose.msra.mxu0 0.0
        %1577 = vmatpush.xpose.msra.mxu0 0.0
        %1578 = vmatpush.xpose.msra.mxu0 0.0
        %1579 = vmatpush.xpose.msra.mxu0 0.0
        %1580 = vmatpush.xpose.msra.mxu0 0.0
        %1581 = vmatpush.xpose.msra.mxu0 0.0
        %1582 = vmatpush.xpose.msra.mxu0 0.0
        %1583 = vmatpush.xpose.msra.mxu0 0.0
        %1584 = vmatpush.xpose.msra.mxu0 0.0
        %1585 = vmatpush.xpose.msra.mxu0 %v1348
        %1586 = vmatmul.f32.gmra.mxu0 %v458
        %v1587 = vpop.f32.mrf.mxu0
        %v1588 = vadd.f32 %v1568, %v1587
        %1589 = vdwg.mxu0
        %1590 = vmatpush.xpose.msra.mxu0 0.0
        %1591 = vmatpush.xpose.msra.mxu0 0.0
        %1592 = vmatpush.xpose.msra.mxu0 0.0
        %1593 = vmatpush.xpose.msra.mxu0 0.0
        %1594 = vmatpush.xpose.msra.mxu0 0.0
        %1595 = vmatpush.xpose.msra.mxu0 0.0
        %1596 = vmatpush.xpose.msra.mxu0 0.0
        %1597 = vmatpush.xpose.msra.mxu0 0.0
        %1598 = vmatpush.xpose.msra.mxu0 0.0
        %1599 = vmatpush.xpose.msra.mxu0 0.0
        %1600 = vmatpush.xpose.msra.mxu0 0.0
        %1601 = vmatpush.xpose.msra.mxu0 0.0
        %1602 = vmatpush.xpose.msra.mxu0 0.0
        %1603 = vmatpush.xpose.msra.mxu0 0.0
        %1604 = vmatpush.xpose.msra.mxu0 0.0
        %1605 = vmatpush.xpose.msra.mxu0 %v1349
        %1606 = vmatmul.f32.gmra.mxu0 %v459
        %v1607 = vpop.f32.mrf.mxu0
        %v1608 = vadd.f32 %v1588, %v1607
        %1609 = vdwg.mxu0
        %1610 = vmatpush.xpose.msra.mxu0 0.0
        %1611 = vmatpush.xpose.msra.mxu0 0.0
        %1612 = vmatpush.xpose.msra.mxu0 0.0
        %1613 = vmatpush.xpose.msra.mxu0 0.0
        %1614 = vmatpush.xpose.msra.mxu0 0.0
        %1615 = vmatpush.xpose.msra.mxu0 0.0
        %1616 = vmatpush.xpose.msra.mxu0 0.0
        %1617 = vmatpush.xpose.msra.mxu0 0.0
        %1618 = vmatpush.xpose.msra.mxu0 0.0
        %1619 = vmatpush.xpose.msra.mxu0 0.0
        %1620 = vmatpush.xpose.msra.mxu0 0.0
        %1621 = vmatpush.xpose.msra.mxu0 0.0
        %1622 = vmatpush.xpose.msra.mxu0 0.0
        %1623 = vmatpush.xpose.msra.mxu0 0.0
        %1624 = vmatpush.xpose.msra.mxu0 0.0
        %1625 = vmatpush.xpose.msra.mxu0 %v1350
        %1626 = vmatmul.f32.gmra.mxu0 %v460
        %v1627 = vpop.f32.mrf.mxu0
        %v1628 = vadd.f32 %v1608, %v1627
        %1629 = vdwg.mxu0
        %1630 = vmatpush.xpose.msra.mxu0 0.0
        %1631 = vmatpush.xpose.msra.mxu0 0.0
        %1632 = vmatpush.xpose.msra.mxu0 0.0
        %1633 = vmatpush.xpose.msra.mxu0 0.0
        %1634 = vmatpush.xpose.msra.mxu0 0.0
        %1635 = vmatpush.xpose.msra.mxu0 0.0
        %1636 = vmatpush.xpose.msra.mxu0 0.0
        %1637 = vmatpush.xpose.msra.mxu0 0.0
        %1638 = vmatpush.xpose.msra.mxu0 0.0
        %1639 = vmatpush.xpose.msra.mxu0 0.0
        %1640 = vmatpush.xpose.msra.mxu0 0.0
        %1641 = vmatpush.xpose.msra.mxu0 0.0
        %1642 = vmatpush.xpose.msra.mxu0 0.0
        %1643 = vmatpush.xpose.msra.mxu0 0.0
        %1644 = vmatpush.xpose.msra.mxu0 0.0
        %1645 = vmatpush.xpose.msra.mxu0 %v1351
        %1646 = vmatmul.f32.gmra.mxu0 %v461
        %v1647 = vpop.f32.mrf.mxu0
        %v1648 = vadd.f32 %v1628, %v1647
        %1649 = vdwg.mxu0
        %1650 = vmatpush.xpose.msra.mxu0 0.0
        %1651 = vmatpush.xpose.msra.mxu0 0.0
        %1652 = vmatpush.xpose.msra.mxu0 0.0
        %1653 = vmatpush.xpose.msra.mxu0 0.0
        %1654 = vmatpush.xpose.msra.mxu0 0.0
        %1655 = vmatpush.xpose.msra.mxu0 0.0
        %1656 = vmatpush.xpose.msra.mxu0 0.0
        %1657 = vmatpush.xpose.msra.mxu0 0.0
        %1658 = vmatpush.xpose.msra.mxu0 0.0
        %1659 = vmatpush.xpose.msra.mxu0 0.0
        %1660 = vmatpush.xpose.msra.mxu0 0.0
        %1661 = vmatpush.xpose.msra.mxu0 0.0
        %1662 = vmatpush.xpose.msra.mxu0 0.0
        %1663 = vmatpush.xpose.msra.mxu0 0.0
        %1664 = vmatpush.xpose.msra.mxu0 0.0
        %1665 = vmatpush.xpose.msra.mxu0 %v1352
        %1666 = vmatmul.f32.gmra.mxu0 %v462
        %v1667 = vpop.f32.mrf.mxu0
        %v1668 = vadd.f32 %v1648, %v1667
        %1669 = vdwg.mxu0
        %1670 = vmatpush.xpose.msra.mxu0 0.0
        %1671 = vmatpush.xpose.msra.mxu0 0.0
        %1672 = vmatpush.xpose.msra.mxu0 0.0
        %1673 = vmatpush.xpose.msra.mxu0 0.0
        %1674 = vmatpush.xpose.msra.mxu0 0.0
        %1675 = vmatpush.xpose.msra.mxu0 0.0
        %1676 = vmatpush.xpose.msra.mxu0 0.0
        %1677 = vmatpush.xpose.msra.mxu0 0.0
        %1678 = vmatpush.xpose.msra.mxu0 0.0
        %1679 = vmatpush.xpose.msra.mxu0 0.0
        %1680 = vmatpush.xpose.msra.mxu0 0.0
        %1681 = vmatpush.xpose.msra.mxu0 0.0
        %1682 = vmatpush.xpose.msra.mxu0 0.0
        %1683 = vmatpush.xpose.msra.mxu0 0.0
        %1684 = vmatpush.xpose.msra.mxu0 0.0
        %1685 = vmatpush.xpose.msra.mxu0 %v1353
        %1686 = vmatmul.f32.gmra.mxu0 %v463
        %v1687 = vpop.f32.mrf.mxu0
        %v1688 = vadd.f32 %v1668, %v1687
        %1689 = vdwg.mxu0
        %v1690 = vld [vmem:[#allocation7] sm:$0xff]
        %vm1691 = vcmask 64512
        %v1693 = vsel %vm1691, %v1690, 0
        %1695 = vmatpush.msra.mxu0 0.0
        %1696 = vmatpush.msra.mxu0 0.0
        %1697 = vmatpush.msra.mxu0 0.0
        %1698 = vmatpush.msra.mxu0 0.0
        %1699 = vmatpush.msra.mxu0 0.0
        %1700 = vmatpush.msra.mxu0 0.0
        %1701 = vmatpush.msra.mxu0 0.0
        %1702 = vmatpush.msra.mxu0 0.0
        %1703 = vmatpush.msra.mxu0 0.0
        %1704 = vmatpush.msra.mxu0 0.0
        %1705 = vmatpush.msra.mxu0 0.0
        %1706 = vmatpush.msra.mxu0 0.0
        %1707 = vmatpush.msra.mxu0 0.0
        %1708 = vmatpush.msra.mxu0 0.0
        %1709 = vmatpush.msra.mxu0 0.0
        %1710 = vmatpush.msra.mxu0 %v1688
        %1711 = vmatmul.f32.gmra.mxu0 %v1693
        %v1712 = vpop.f32.mrf.mxu0
        %v1713 = vadd.f32 0.0, %v1712
        %1714 = vdwg.mxu0
        %v1715 = vld [vmem:[#allocation8] sm:$0xf]
        %s1716 = scalar_lea.vmem [#allocation7], 8
        %v1717 = vld [vmem:[%s1716] sm:$0xff]
        %v1719 = vsel %vm1691, %v1717, 0
        %1721 = vmatpush.msra.mxu0 0.0
        %1722 = vmatpush.msra.mxu0 0.0
        %1723 = vmatpush.msra.mxu0 0.0
        %1724 = vmatpush.msra.mxu0 0.0
        %1725 = vmatpush.msra.mxu0 0.0
        %1726 = vmatpush.msra.mxu0 0.0
        %1727 = vmatpush.msra.mxu0 0.0
        %1728 = vmatpush.msra.mxu0 0.0
        %1729 = vmatpush.msra.mxu0 0.0
        %1730 = vmatpush.msra.mxu0 0.0
        %1731 = vmatpush.msra.mxu0 0.0
        %1732 = vmatpush.msra.mxu0 0.0
        %1733 = vmatpush.msra.mxu0 0.0
        %1734 = vmatpush.msra.mxu0 0.0
        %1735 = vmatpush.msra.mxu0 0.0
        %1736 = vmatpush.msra.mxu0 %v1688
        %1737 = vmatmul.f32.gmra.mxu0 %v1719
        %v1738 = vpop.f32.mrf.mxu0
        %v1739 = vadd.f32 0.0, %v1738
        %1740 = vdwg.mxu0
        %s1741 = scalar_lea.vmem [#allocation8], 4
        %v1742 = vld [vmem:[%s1741] sm:$0xf]
        %v1744 = vsel %vm506, %v1739, 0
        %v1747 = vsel %vm510, %v1742, 0
        %1749 = vmatpush.msra.mxu0 0.0
        %1750 = vmatpush.msra.mxu0 0.0
        %1751 = vmatpush.msra.mxu0 0.0
        %1752 = vmatpush.msra.mxu0 0.0
        %1753 = vmatpush.msra.mxu0 0.0
        %1754 = vmatpush.msra.mxu0 0.0
        %1755 = vmatpush.msra.mxu0 0.0
        %1756 = vmatpush.msra.mxu0 0.0
        %1757 = vmatpush.msra.mxu0 0.0
        %1758 = vmatpush.msra.mxu0 0.0
        %1759 = vmatpush.msra.mxu0 0.0
        %1760 = vmatpush.msra.mxu0 0.0
        %1761 = vmatpush.msra.mxu0 0.0
        %1762 = vmatpush.msra.mxu0 0.0
        %1763 = vmatpush.msra.mxu0 0.0
        %1764 = vmatpush.msra.mxu0 %v1747
        %1765 = vmatmul.f32.gmra.mxu0 %v1744
        %v1766 = vpop.f32.mrf.mxu0
        %v1767 = vadd.f32 0.0, %v1766
        %1768 = vdwg.mxu0
        %v1770 = vsel %vm506, %v1713, 0
        %v1773 = vsel %vm510, %v1715, 0
        %1775 = vmatpush.msra.mxu0 0.0
        %1776 = vmatpush.msra.mxu0 0.0
        %1777 = vmatpush.msra.mxu0 0.0
        %1778 = vmatpush.msra.mxu0 0.0
        %1779 = vmatpush.msra.mxu0 0.0
        %1780 = vmatpush.msra.mxu0 0.0
        %1781 = vmatpush.msra.mxu0 0.0
        %1782 = vmatpush.msra.mxu0 0.0
        %1783 = vmatpush.msra.mxu0 0.0
        %1784 = vmatpush.msra.mxu0 0.0
        %1785 = vmatpush.msra.mxu0 0.0
        %1786 = vmatpush.msra.mxu0 0.0
        %1787 = vmatpush.msra.mxu0 0.0
        %1788 = vmatpush.msra.mxu0 0.0
        %1789 = vmatpush.msra.mxu0 0.0
        %1790 = vmatpush.msra.mxu0 %v1773
        %1791 = vmatmul.f32.gmra.mxu0 %v1770
        %v1792 = vpop.f32.mrf.mxu0
        %v1793 = vadd.f32 %v1767, %v1792
        %1794 = vdwg.mxu0
        %s1795 = scalar_lea.vmem [#allocation7], 16
        %v1796 = vld [vmem:[%s1795] sm:$0xff]
        %v1798 = vsel %vm1691, %v1796, 0
        %1800 = vmatpush.msra.mxu0 0.0
        %1801 = vmatpush.msra.mxu0 0.0
        %1802 = vmatpush.msra.mxu0 0.0
        %1803 = vmatpush.msra.mxu0 0.0
        %1804 = vmatpush.msra.mxu0 0.0
        %1805 = vmatpush.msra.mxu0 0.0
        %1806 = vmatpush.msra.mxu0 0.0
        %1807 = vmatpush.msra.mxu0 0.0
        %1808 = vmatpush.msra.mxu0 0.0
        %1809 = vmatpush.msra.mxu0 0.0
        %1810 = vmatpush.msra.mxu0 0.0
        %1811 = vmatpush.msra.mxu0 0.0
        %1812 = vmatpush.msra.mxu0 0.0
        %1813 = vmatpush.msra.mxu0 0.0
        %1814 = vmatpush.msra.mxu0 0.0
        %1815 = vmatpush.msra.mxu0 %v1688
        %1816 = vmatmul.f32.gmra.mxu0 %v1798
        %v1817 = vpop.f32.mrf.mxu0
        %v1818 = vadd.f32 0.0, %v1817
        %1819 = vdwg.mxu0
        %s1820 = scalar_lea.vmem [#allocation8], 8
        %v1821 = vld [vmem:[%s1820] sm:$0xf]
        %v1823 = vsel %vm506, %v1818, 0
        %v1826 = vsel %vm510, %v1821, 0
        %1828 = vmatpush.msra.mxu0 0.0
        %1829 = vmatpush.msra.mxu0 0.0
        %1830 = vmatpush.msra.mxu0 0.0
        %1831 = vmatpush.msra.mxu0 0.0
        %1832 = vmatpush.msra.mxu0 0.0
        %1833 = vmatpush.msra.mxu0 0.0
        %1834 = vmatpush.msra.mxu0 0.0
        %1835 = vmatpush.msra.mxu0 0.0
        %1836 = vmatpush.msra.mxu0 0.0
        %1837 = vmatpush.msra.mxu0 0.0
        %1838 = vmatpush.msra.mxu0 0.0
        %1839 = vmatpush.msra.mxu0 0.0
        %1840 = vmatpush.msra.mxu0 0.0
        %1841 = vmatpush.msra.mxu0 0.0
        %1842 = vmatpush.msra.mxu0 0.0
        %1843 = vmatpush.msra.mxu0 %v1826
        %1844 = vmatmul.f32.gmra.mxu0 %v1823
        %v1845 = vpop.f32.mrf.mxu0
        %v1846 = vadd.f32 0.0, %v1845
        %1847 = vdwg.mxu0
        %v1848 = vadd.f32 %v1793, %v1846
        %v1849 = vld [vmem:[%s6] sm:$0x1]
        %v1851 = vperm.slane %v1849, 0
        %v1853 = vadd.f32 %v1848, %v1851
        %v1854 = vmul.f32 %v1853, 0.5
        %v1855 = vmul.f32 %v1853, 0.044715
        %v1856 = vmul.f32 %v1855, %v1853
        %v1857 = vmul.f32 %v1856, %v1853
        %v1858 = vadd.f32 %v1853, %v1857
        %v1859 = vmul.f32 %v1858, 0.7978846
        %v1860 = vtanh.pop %v1859
        %v1861 = vadd.f32 %v1860, 1.0
        %v1862 = vmul.f32 %v1854, %v1861
        %v1863 = vld [vmem:[%s7] sm:$0xf]
        %v1864 = vld [vmem:[#allocation10] sm:$0xf]
        %v1866 = vsel %vm506, %v1862, 0
        %v1869 = vsel %vm510, %v1864, 0
        %1871 = vmatpush.msra.mxu0 0.0
        %1872 = vmatpush.msra.mxu0 0.0
        %1873 = vmatpush.msra.mxu0 0.0
        %1874 = vmatpush.msra.mxu0 0.0
        %1875 = vmatpush.msra.mxu0 0.0
        %1876 = vmatpush.msra.mxu0 0.0
        %1877 = vmatpush.msra.mxu0 0.0
        %1878 = vmatpush.msra.mxu0 0.0
        %1879 = vmatpush.msra.mxu0 0.0
        %1880 = vmatpush.msra.mxu0 0.0
        %1881 = vmatpush.msra.mxu0 0.0
        %1882 = vmatpush.msra.mxu0 0.0
        %1883 = vmatpush.msra.mxu0 0.0
        %1884 = vmatpush.msra.mxu0 0.0
        %1885 = vmatpush.msra.mxu0 0.0
        %1886 = vmatpush.msra.mxu0 %v1869
        %1887 = vmatmul.f32.gmra.mxu0 %v1866
        %v1888 = vpop.f32.mrf.mxu0
        %v1889 = vadd.f32 0.0, %v1888
        %1890 = vdwg.mxu0
        %v1892 = vsel %vm506, %v1325, 0
        %v1895 = vsel %vm510, %v1863, 0
        %1897 = vmatpush.msra.mxu0 0.0
        %1898 = vmatpush.msra.mxu0 0.0
        %1899 = vmatpush.msra.mxu0 0.0
        %1900 = vmatpush.msra.mxu0 0.0
        %1901 = vmatpush.msra.mxu0 0.0
        %1902 = vmatpush.msra.mxu0 0.0
        %1903 = vmatpush.msra.mxu0 0.0
        %1904 = vmatpush.msra.mxu0 0.0
        %1905 = vmatpush.msra.mxu0 0.0
        %1906 = vmatpush.msra.mxu0 0.0
        %1907 = vmatpush.msra.mxu0 0.0
        %1908 = vmatpush.msra.mxu0 0.0
        %1909 = vmatpush.msra.mxu0 0.0
        %1910 = vmatpush.msra.mxu0 0.0
        %1911 = vmatpush.msra.mxu0 0.0
        %1912 = vmatpush.msra.mxu0 %v1895
        %1913 = vmatmul.f32.gmra.mxu0 %v1892
        %v1914 = vpop.f32.mrf.mxu0
        %v1915 = vadd.f32 %v1889, %v1914
        %1916 = vdwg.mxu0
        %v1917 = vld [vmem:[%s9] sm:$0x1]
        %v1919 = vperm.slane %v1917, 0
        %v1921 = vadd.f32 %v1915, %v1919
        %v1922 = vmul.f32 %v1921, 0.5
        %v1923 = vmul.f32 %v1921, 0.044715
        %v1924 = vmul.f32 %v1923, %v1921
        %v1925 = vmul.f32 %v1924, %v1921
        %v1926 = vadd.f32 %v1921, %v1925
        %v1927 = vmul.f32 %v1926, 0.7978846
        %v1928 = vtanh.pop %v1927
        %v1929 = vadd.f32 %v1928, 1.0
        %v1930 = vmul.f32 %v1922, %v1929
        %1931 = vst [vmem:[%s439] sm:$0xff] %v1930
        %s1932 = sand.u32 %s252, 1
        %s1933 = scalar_lea.sflag [#allocation4], %s1932
        %s1934 = sand.u32 %s252, 1
        %s1935 = smul.addr %s1934, 8
        %s1936 = scalar_lea.vmem [#allocation11], %s1935
        // Predicated region
        $region81: #{tpu_custom_call.1} parent=59 // pred_check
          %p1937 = pneg %p262
        $region82: #{tpu_custom_call.1} parent=59 // pred_check_branch
          %1939 = sbr.rel (%p1937) target = $region84
        $region83: #{tpu_custom_call.1} parent=59 // pred_region
          %1941 = vsyncadd %s1933, 0
          %s1942 = smul.addr %s29, 8
          %s1943 = scalar_lea.hbm %s10, %s1942
          %s1945 = sshll.u32 %s1936, 4
          %s1946 = int_to_ptr.vmem [resolvable:$true] %s1945
          %s1947 = sshll.u32 %s1943, 4
          %s1948 = int_to_ptr.hbm [resolvable:$true] %s1947
          %1950 = dma.vmem_to_hbm [thread:$0]  %s1946, 128, %s1948, %s1933
        $region84: #{tpu_custom_call.1} parent=59 // pred_fallthru
          _
      $region60: #{tpu_custom_call.1} parent=5 // pred_fallthru
        _
      %p1951 = scmp.le.s32.totalorder 2, %s24
      // Predicated region
      $region85: #{tpu_custom_call.1} parent=5 // pred_check
        %p1952 = pneg %p1951
      $region86: #{tpu_custom_call.1} parent=5 // pred_check_branch
        %1954 = sbr.rel (%p1952) target = $region88
      $region87: #{tpu_custom_call.1} parent=5 // pred_region
        %s1955 = ssub.s32 %s24, 2
        // Predicated region
        $region89: #{tpu_custom_call.1} parent=87 // pred_check
          %p1956 = pneg %p268
        $region90: #{tpu_custom_call.1} parent=87 // pred_check_branch
          %1958 = sbr.rel (%p1956) target = $region92
        $region91: #{tpu_custom_call.1} parent=87 // pred_region
          %s1959 = sand.u32 %s253, 1
          %s1960 = scalar_lea.sflag [#allocation4], %s1959
          %s1961 = sand.u32 %s253, 1
          %s1962 = smul.addr %s1961, 8
          %s1963 = scalar_lea.vmem [#allocation11], %s1962
          %1965 = dma.done %s1960, 128
        $region92: #{tpu_custom_call.1} parent=87 // pred_fallthru
          _
      $region88: #{tpu_custom_call.1} parent=5 // pred_fallthru
        _
    $region6: #{tpu_custom_call.1} parent=1 // loop_footer
      %s28 = sadd.s32 1, %s24
    $region7: #{tpu_custom_call.1} parent=1 // loop_footer_branch
      %23 = sbr.rel target = $region3
    $region8: #{tpu_custom_call.1} parent=1 // loop_exit
      _
    %1966 = vsyncpa [#allocation3], 1
    %s1967 = scalar_lea.sflag [#allocation3], 1
    %1968 = vsyncpa %s1967, 1
    %1969 = vsyncpa [#allocation6], 1
    %1970 = vsyncpa [#allocation9], 1
    %1971 = vsyncpa [#allocation4], 1
    %s1972 = scalar_lea.sflag [#allocation4], 1
    %1973 = vsyncpa %s1972, 1

</llo_original>
